<compile_context>
chip_gen: v5e
topology: v5e:2x2
jax: 0.10.0
libtpu: 0.0.40
codegen_flags: <defaults>
</compile_context>

<pallas_src>
import functools

import jax
import jax.numpy as jnp
from jax import lax
from jax.experimental import pallas as pl
from jax.experimental.pallas import tpu as pltpu


def _slab_contrib(s, p, n, s_j, p_j, m_j, *, sigma, rho):
    """Contribution of one j-slab to pos_divide, vectorized over the T pairs.

    s, p, n  : (T, F, F)  per-pair sim / pseudo-pos / pseudo-neg matrices
    s_j, p_j : (T, F, TJ) columns j0:j0+TJ of s / p
    m_j      : (TJ, F)    rows j0:j0+TJ of the off-diagonal mask
    returns  : (T, F)     sum_{j in slab}  sim_pos_rk / sim_all_rk * p[:, :, j]
    """
    inv_sigma = 1.0 / sigma
    diff = s[:, :, None, :] - s_j[:, :, :, None]          # (T, F, TJ, F)
    pp = p[:, :, None, :] * p_j[:, :, :, None]            # pos-pos mask (0/1)
    pn = n[:, :, None, :] * p_j[:, :, :, None]            # pos-neg mask (0/1)
    mb = m_j[None, None, :, :]                             # off-diagonal mask

    gt = diff > 0.0
    hv = gt.astype(diff.dtype)                             # heaviside
    t = diff * inv_sigma
    # quad_linear: 2t+1 for diff>0, (t+1)^2 clamped at 0 otherwise.
    ql = jnp.where(gt, 2.0 * t + 1.0, jnp.square(jnp.maximum(t + 1.0, 0.0)))

    a = (pp * (rho * hv)) * mb                             # pos-pos branch
    b = ((1.0 - pp) * (pn * ql)) * mb                      # pos-neg branch

    pos_rk = jnp.sum(a, axis=-1) + 1.0                     # (T, F, TJ)
    all_rk = pos_rk + jnp.sum(b, axis=-1)                  # (T, F, TJ)
    return jnp.sum((pos_rk / all_rk) * p_j, axis=-1)       # (T, F)


def _ap_kernel(mask_ref, sim_ref, pos_ref, neg_ref, out_ref, *, sigma, rho, tj):
    T, F, _ = sim_ref.shape
    nj = F // tj

    s = sim_ref[...]
    p = pos_ref[...]
    n = neg_ref[...]

    if nj <= 8:
        # Small trip count: statically unrolled j-slab loop (static slices).
        m = mask_ref[...]
        pos_divide = jnp.zeros((T, F), s.dtype)
        for jt in range(nj):
            j0 = jt * tj
            pos_divide = pos_divide + _slab_contrib(
                s, p, n,
                s[:, :, j0:j0 + tj], p[:, :, j0:j0 + tj], m[j0:j0 + tj, :],
                sigma=sigma, rho=rho)
    else:
        # TODO(synk): dynamic lane-dim slicing path is only exercised for very
        # large F (>~128 with TJ<F); kept as a fori_loop to bound live temps.
        def body(jt, acc):
            j0 = pl.multiple_of(jt * tj, tj)
            return acc + _slab_contrib(
                s, p, n,
                sim_ref[:, :, pl.ds(j0, tj)],
                pos_ref[:, :, pl.ds(j0, tj)],
                mask_ref[pl.ds(j0, tj), :],
                sigma=sigma, rho=rho)

        pos_divide = lax.fori_loop(0, nj, body, jnp.zeros((T, F), s.dtype))

    pos_cnt = jnp.sum(p, axis=-1)                          # (T, F)
    ratio = pos_divide / pos_cnt                           # (T, F)
    # Per-pair AP (mean over frames), written as one lane-dense row per step.
    out_ref[...] = jnp.mean(ratio, axis=-1).reshape(1, 1, T)


def _choose_tiles(num_pairs, frame_num):
    """Pick (pairs-per-step T, j-tile TJ) keeping VMEM usage modest on all chips."""
    in_block_bytes = 4 * frame_num * frame_num            # one f32 (F, F) pair tile
    # ~1 MiB per input block per step; cap at 128 pairs and at the pair count.
    t = max(1, min(num_pairs, 128, (1 << 20) // max(1, in_block_bytes)))
    # Keep >= 2 grid steps when possible so v7x's 2 TensorCores both get work.
    if num_pairs >= 2:
        t = min(t, max(1, num_pairs // 2))

    # Bound ~6 live (T, F, TJ, F) f32 slab temps to ~8 MiB (safe for v7x VMEM).
    budget = 8 << 20

    def slab_bytes(t_, tj_):
        return 6 * 4 * t_ * frame_num * tj_ * frame_num

    tj = frame_num
    while t > 1 and slab_bytes(t, tj) > budget:
        t = max(1, t // 2)
    if slab_bytes(t, tj) > budget:
        for d in range(frame_num, 0, -1):
            if frame_num % d == 0 and slab_bytes(t, d) <= budget:
                tj = d
                break
        else:
            tj = 1
    return t, tj


def tb_inner_quad_linear_ap(sim, pos, neg, label, *, sigma, rho):
    B1, B2, F, _ = sim.shape
    P = B1 * B2
    sim_f = sim.reshape(P, F, F).astype(jnp.float32)
    pos_f = pos.reshape(P, F, F).astype(jnp.float32)
    neg_f = neg.reshape(P, F, F).astype(jnp.float32)

    T, TJ = _choose_tiles(P, F)
    G = -(-P // T)                                         # ceil(P / T)
    P_pad = G * T
    if P_pad != P:
        pad = P_pad - P
        sim_f = jnp.pad(sim_f, ((0, pad), (0, 0), (0, 0)))
        # Pad pos with ones so padded rows have pos_cnt > 0 (no NaNs); padded
        # outputs are sliced off below anyway.
        pos_f = jnp.pad(pos_f, ((0, pad), (0, 0), (0, 0)), constant_values=1.0)
        neg_f = jnp.pad(neg_f, ((0, pad), (0, 0), (0, 0)))

    mask = 1.0 - jnp.eye(F, dtype=jnp.float32)             # precomputed once

    kernel = functools.partial(_ap_kernel, sigma=float(sigma), rho=float(rho), tj=TJ)
    ap_rows = pl.pallas_call(
        kernel,
        out_shape=jax.ShapeDtypeStruct((G, 1, T), jnp.float32),
        grid=(G,),
        in_specs=[
            pl.BlockSpec((F, F), lambda g: (0, 0)),        # off-diagonal mask
            pl.BlockSpec((T, F, F), lambda g: (g, 0, 0)),  # sim
            pl.BlockSpec((T, F, F), lambda g: (g, 0, 0)),  # pseudo pos labels
            pl.BlockSpec((T, F, F), lambda g: (g, 0, 0)),  # pseudo neg labels
        ],
        out_specs=pl.BlockSpec((1, 1, T), lambda g: (g, 0, 0)),
        compiler_params=pltpu.CompilerParams(
            dimension_semantics=("parallel",),
            vmem_limit_bytes=48 * 1024 * 1024),
    )(mask, sim_f, pos_f, neg_f)

    ap_pair = ap_rows.reshape(P_pad)[:P].reshape(B1, B2)   # per-(b1,b2) AP
    label = label.astype(jnp.float32)
    ap = jnp.sum(ap_pair * label) / jnp.sum(label)
    return 1.0 - ap


# ----------------------- pure-JAX reference (for verification) -----------------------
def _quad_linear(t, sigma):
    return jnp.where(
        t > 0, 2 * t / sigma + 1,
        jnp.where((t >= -sigma) & (t <= 0), (t / sigma) ** 2 + 2 * t / sigma + 1,
                  jnp.zeros_like(t)))


def _heaviside(t):
    return jnp.where(t > 0, jnp.ones_like(t), jnp.zeros_like(t))


def reference(sim, pos, neg, label, sigma, rho):
    B, _, F, _ = sim.shape
    mask = (1.0 - jnp.eye(F))[None, None, None]
    rep = jnp.broadcast_to(sim[:, :, :, None, :], (B, B, F, F, F))
    diff = rep - jnp.swapaxes(rep, -1, -2)
    pos_rep = jnp.broadcast_to(pos[:, :, :, None, :], (B, B, F, F, F))
    pp = pos_rep * jnp.swapaxes(pos_rep, -1, -2)
    neg_rep = jnp.broadcast_to(neg[:, :, :, None, :], (B, B, F, F, F))
    pn = neg_rep * jnp.swapaxes(pos_rep, -1, -2)
    sim_sl = jnp.where(pn == 1.0, _quad_linear(diff, sigma), jnp.zeros_like(diff)) * mask
    sim_sl_sg = jnp.where(pp == 1.0, rho * _heaviside(diff), sim_sl) * mask
    all_rk = jnp.sum(sim_sl_sg, axis=-1) + 1
    pos_sg = jnp.where(pp == 1, sim_sl_sg, jnp.zeros_like(sim_sl_sg))
    pos_rk = jnp.sum(pos_sg, axis=-1) + 1
    pos_divide = jnp.sum(pos_rk / all_rk * pos, axis=-1)
    pos_cnt = jnp.sum(pos, axis=-1)
    ap_matrix = jnp.mean(pos_divide / pos_cnt, axis=-1)
    ap = jnp.sum(ap_matrix * label) / jnp.sum(label)
    return 1 - ap


if __name__ == "__main__":
    B, F = 2, 8            # batch_size, frame_num
    sigma, rho = 0.1, 1.0  # module hyper-parameters (deterministic)

    key = jax.random.PRNGKey(0)
    k1, k2, k3, k4 = jax.random.split(key, 4)
    sim = jax.random.uniform(k1, (B, B, F, F), dtype=jnp.float32)
    pos = (jax.random.uniform(k2, (B, B, F, F)) > 0.5).astype(jnp.float32)
    # guarantee >=1 positive per (b1, b2, i) row so pos_cnt_vec > 0 (no NaNs)
    pos = jnp.maximum(pos, jnp.broadcast_to(jnp.eye(F, dtype=jnp.float32), (B, B, F, F)))
    neg = (jax.random.uniform(k3, (B, B, F, F)) > 0.5).astype(jnp.float32)
    label = (jax.random.uniform(k4, (B, B)) > 0.5).astype(jnp.float32)
    label = label.at[0, 0].set(1.0)  # guarantee sum(label) > 0

    loss = tb_inner_quad_linear_ap(sim, pos, neg, label, sigma=sigma, rho=rho)
    jax.block_until_ready(loss)

    ref = reference(sim, pos, neg, label, sigma, rho)
    assert jnp.allclose(loss, ref, atol=1e-5, rtol=1e-5), (loss, ref)
    print("KERNEL_OK")
</pallas_src>

<mosaic_0001>
module attributes {stable_mosaic.version = 11 : i64} {
  func.func @_ap_kernel(%arg0: i32, %arg1: memref<8x8xf32, #tpu.memory_space<vmem>>, %arg2: memref<2x8x8xf32, #tpu.memory_space<vmem>>, %arg3: memref<2x8x8xf32, #tpu.memory_space<vmem>>, %arg4: memref<2x8x8xf32, #tpu.memory_space<vmem>>, %arg5: memref<1x1x2xf32, #tpu.memory_space<vmem>>) attributes {dimension_semantics = [#tpu.dimension_semantics<parallel>], iteration_bounds = array<i64: 2>, scalar_prefetch = 0 : i64, scratch_operands = 0 : i64, tpu.core_type = #tpu.core_type<tc>, window_params = [{pipeline_mode = #tpu.pipeline_mode<synchronous>, transform_indices = @transform_0, window_bounds = array<i64: 8, 8>}, {transform_indices = @transform_1, window_bounds = array<i64: 2, 8, 8>}, {transform_indices = @transform_2, window_bounds = array<i64: 2, 8, 8>}, {transform_indices = @transform_3, window_bounds = array<i64: 2, 8, 8>}, {transform_indices = @transform_4, window_bounds = array<i64: 1, 1, 2>}]} {
    %c0 = arith.constant 0 : index
    %c0_0 = arith.constant 0 : index
    %c0_1 = arith.constant 0 : index
    %0 = vector.load %arg2[%c0, %c0_0, %c0_1] : memref<2x8x8xf32, #tpu.memory_space<vmem>>, vector<2x8x8xf32>
    %c0_2 = arith.constant 0 : index
    %c0_3 = arith.constant 0 : index
    %c0_4 = arith.constant 0 : index
    %1 = vector.load %arg3[%c0_2, %c0_3, %c0_4] : memref<2x8x8xf32, #tpu.memory_space<vmem>>, vector<2x8x8xf32>
    %c0_5 = arith.constant 0 : index
    %c0_6 = arith.constant 0 : index
    %c0_7 = arith.constant 0 : index
    %2 = vector.load %arg4[%c0_5, %c0_6, %c0_7] : memref<2x8x8xf32, #tpu.memory_space<vmem>>, vector<2x8x8xf32>
    %c0_8 = arith.constant 0 : index
    %c0_9 = arith.constant 0 : index
    %3 = vector.load %arg1[%c0_8, %c0_9] : memref<8x8xf32, #tpu.memory_space<vmem>>, vector<8x8xf32>
    %cst = arith.constant 0.000000e+00 : f32
    %4 = vector.broadcast %cst : f32 to vector<2x8xf32>
    %5 = vector.shape_cast %0 : vector<2x8x8xf32> to vector<2x8x1x8xf32>
    %6 = vector.shape_cast %0 : vector<2x8x8xf32> to vector<2x8x8x1xf32>
    %7 = vector.broadcast %5 : vector<2x8x1x8xf32> to vector<2x8x8x8xf32>
    %8 = vector.broadcast %6 : vector<2x8x8x1xf32> to vector<2x8x8x8xf32>
    %9 = arith.subf %7, %8 : vector<2x8x8x8xf32>
    %10 = vector.shape_cast %1 : vector<2x8x8xf32> to vector<2x8x1x8xf32>
    %11 = vector.shape_cast %1 : vector<2x8x8xf32> to vector<2x8x8x1xf32>
    %12 = vector.broadcast %10 : vector<2x8x1x8xf32> to vector<2x8x8x8xf32>
    %13 = vector.broadcast %11 : vector<2x8x8x1xf32> to vector<2x8x8x8xf32>
    %14 = arith.mulf %12, %13 : vector<2x8x8x8xf32>
    %15 = vector.shape_cast %2 : vector<2x8x8xf32> to vector<2x8x1x8xf32>
    %16 = vector.shape_cast %1 : vector<2x8x8xf32> to vector<2x8x8x1xf32>
    %17 = vector.broadcast %15 : vector<2x8x1x8xf32> to vector<2x8x8x8xf32>
    %18 = vector.broadcast %16 : vector<2x8x8x1xf32> to vector<2x8x8x8xf32>
    %19 = arith.mulf %17, %18 : vector<2x8x8x8xf32>
    %20 = vector.shape_cast %3 : vector<8x8xf32> to vector<1x1x8x8xf32>
    %cst_10 = arith.constant 0.000000e+00 : f32
    %21 = vector.broadcast %cst_10 : f32 to vector<2x8x8x8xf32>
    %22 = arith.cmpf ogt, %9, %21 : vector<2x8x8x8xf32>
    %23 = arith.extui %22 : vector<2x8x8x8xi1> to vector<2x8x8x8xi32>
    %24 = arith.sitofp %23 : vector<2x8x8x8xi32> to vector<2x8x8x8xf32>
    %cst_11 = arith.constant 1.000000e+01 : f32
    %25 = vector.broadcast %cst_11 : f32 to vector<2x8x8x8xf32>
    %26 = arith.mulf %9, %25 : vector<2x8x8x8xf32>
    %cst_12 = arith.constant 2.000000e+00 : f32
    %27 = vector.broadcast %cst_12 : f32 to vector<2x8x8x8xf32>
    %28 = arith.mulf %27, %26 : vector<2x8x8x8xf32>
    %cst_13 = arith.constant 1.000000e+00 : f32
    %29 = vector.broadcast %cst_13 : f32 to vector<2x8x8x8xf32>
    %30 = arith.addf %28, %29 : vector<2x8x8x8xf32>
    %cst_14 = arith.constant 1.000000e+00 : f32
    %31 = vector.broadcast %cst_14 : f32 to vector<2x8x8x8xf32>
    %32 = arith.addf %26, %31 : vector<2x8x8x8xf32>
    %cst_15 = arith.constant 0.000000e+00 : f32
    %33 = vector.broadcast %cst_15 : f32 to vector<2x8x8x8xf32>
    %34 = arith.maximumf %32, %33 : vector<2x8x8x8xf32>
    %35 = arith.mulf %34, %34 : vector<2x8x8x8xf32>
    %36 = arith.select %22, %30, %35 : vector<2x8x8x8xi1>, vector<2x8x8x8xf32>
    %cst_16 = arith.constant 1.000000e+00 : f32
    %37 = vector.broadcast %cst_16 : f32 to vector<2x8x8x8xf32>
    %38 = arith.mulf %37, %24 : vector<2x8x8x8xf32>
    %39 = arith.mulf %14, %38 : vector<2x8x8x8xf32>
    %40 = vector.broadcast %20 : vector<1x1x8x8xf32> to vector<2x8x8x8xf32>
    %41 = arith.mulf %39, %40 : vector<2x8x8x8xf32>
    %cst_17 = arith.constant 1.000000e+00 : f32
    %42 = vector.broadcast %cst_17 : f32 to vector<2x8x8x8xf32>
    %43 = arith.subf %42, %14 : vector<2x8x8x8xf32>
    %44 = arith.mulf %19, %36 : vector<2x8x8x8xf32>
    %45 = arith.mulf %43, %44 : vector<2x8x8x8xf32>
    %46 = vector.broadcast %20 : vector<1x1x8x8xf32> to vector<2x8x8x8xf32>
    %47 = arith.mulf %45, %46 : vector<2x8x8x8xf32>
    %cst_18 = arith.constant dense<0.000000e+00> : vector<2x8x8xf32>
    %48 = vector.multi_reduction <add>, %41, %cst_18 [3] : vector<2x8x8x8xf32> to vector<2x8x8xf32>
    %cst_19 = arith.constant 1.000000e+00 : f32
    %49 = vector.broadcast %cst_19 : f32 to vector<2x8x8xf32>
    %50 = arith.addf %48, %49 : vector<2x8x8xf32>
    %cst_20 = arith.constant dense<0.000000e+00> : vector<2x8x8xf32>
    %51 = vector.multi_reduction <add>, %47, %cst_20 [3] : vector<2x8x8x8xf32> to vector<2x8x8xf32>
    %52 = arith.addf %50, %51 : vector<2x8x8xf32>
    %53 = arith.divf %50, %52 : vector<2x8x8xf32>
    %54 = arith.mulf %53, %1 : vector<2x8x8xf32>
    %cst_21 = arith.constant dense<0.000000e+00> : vector<2x8xf32>
    %55 = vector.multi_reduction <add>, %54, %cst_21 [2] : vector<2x8x8xf32> to vector<2x8xf32>
    %56 = arith.addf %4, %55 : vector<2x8xf32>
    %cst_22 = arith.constant dense<0.000000e+00> : vector<2x8xf32>
    %57 = vector.multi_reduction <add>, %1, %cst_22 [2] : vector<2x8x8xf32> to vector<2x8xf32>
    %58 = arith.divf %56, %57 : vector<2x8xf32>
    %cst_23 = arith.constant dense<0.000000e+00> : vector<2xf32>
    %59 = vector.multi_reduction <add>, %58, %cst_23 [1] : vector<2x8xf32> to vector<2xf32>
    %cst_24 = arith.constant 8.000000e+00 : f32
    %60 = vector.broadcast %cst_24 : f32 to vector<2xf32>
    %61 = arith.divf %59, %60 : vector<2xf32>
    %62 = vector.shape_cast %61 : vector<2xf32> to vector<1x1x2xf32>
    %c0_25 = arith.constant 0 : index
    %c0_26 = arith.constant 0 : index
    %c0_27 = arith.constant 0 : index
    %63 = vector.load %arg5[%c0_25, %c0_26, %c0_27] : memref<1x1x2xf32, #tpu.memory_space<vmem>>, vector<1x1x2xf32>
    tpu.vector_store %arg5[%c0_25, %c0_26, %c0_27], %62 {strides = array<i32>} : memref<1x1x2xf32, #tpu.memory_space<vmem>>, vector<1x1x2xf32>,
    return
  }
  func.func @transform_0(%arg0: i32) -> (i32, i32) {
    %c0_i32 = arith.constant 0 : i32
    %c0_i32_0 = arith.constant 0 : i32
    %c0_i32_1 = arith.constant 0 : i32
    return %c0_i32, %c0_i32_0 : i32, i32
  }
  func.func @transform_1(%arg0: i32) -> (i32, i32, i32) {
    %c0_i32 = arith.constant 0 : i32
    %c0_i32_0 = arith.constant 0 : i32
    %c0_i32_1 = arith.constant 0 : i32
    return %arg0, %c0_i32, %c0_i32_0 : i32, i32, i32
  }
  func.func @transform_2(%arg0: i32) -> (i32, i32, i32) {
    %c0_i32 = arith.constant 0 : i32
    %c0_i32_0 = arith.constant 0 : i32
    %c0_i32_1 = arith.constant 0 : i32
    return %arg0, %c0_i32, %c0_i32_0 : i32, i32, i32
  }
  func.func @transform_3(%arg0: i32) -> (i32, i32, i32) {
    %c0_i32 = arith.constant 0 : i32
    %c0_i32_0 = arith.constant 0 : i32
    %c0_i32_1 = arith.constant 0 : i32
    return %arg0, %c0_i32, %c0_i32_0 : i32, i32, i32
  }
  func.func @transform_4(%arg0: i32) -> (i32, i32, i32) {
    %c0_i32 = arith.constant 0 : i32
    %c0_i32_0 = arith.constant 0 : i32
    %c0_i32_1 = arith.constant 0 : i32
    return %arg0, %c0_i32, %c0_i32_0 : i32, i32, i32
  }
}

</mosaic_0001>

<llo_original>
// kernel: tpu_custom_call.1
$region0: #{tpu_custom_call.1}
  #allocation0 [shape = 'u32[]', space=smem, size = 0x4, offset = 0x4, fixed_abs, tag = 'smem constant byte address 0x4 - core index']
  #allocation1 [shape = 'u32[72,128]{1,0:T(1,128)}', space=vmem, size = 0x9000, scoped, tag = 'internal scratch']
  %s0 = inlined_call_operand.hbm [shape: f32[8,8], index: 0, kind: input, shape index: {}]
  %s1 = inlined_call_operand.hbm [shape: f32[4,8,8], index: 1, kind: input, shape index: {}]
  %s2 = inlined_call_operand.hbm [shape: f32[4,8,8], index: 2, kind: input, shape index: {}]
  %s3 = inlined_call_operand.hbm [shape: f32[4,8,8], index: 3, kind: input, shape index: {}]
  %s4 = inlined_call_operand.hbm [shape: f32[2,1,2], index: 4, kind: output, shape index: {}]
  %s5 = sld [smem:[#allocation0]]
  $region65: #{tpu_custom_call.1} parent=0
    _
  %s7 = ssub.s32 1, %s5
  %s8 = scalar_select 0, %s7, %s5
  $region1: #{tpu_custom_call.1} parent=0
    #allocation2 [shape = 'u8[4096]{0}', space=vmem, size = 0x1000, scoped, tag = 'input window, operand 0, single buffered']
    #allocation3 [shape = 's32[2]{0}', space=sflag, size = 0x8, scoped, tag = 'scoped memory for tpu_custom_call.1']
    #allocation4 [shape = 's32[2]{0}', space=sflag, size = 0x8, scoped, tag = 'scoped memory for tpu_custom_call.1']
    #allocation5 [shape = 'u8[16384]{0}', space=vmem, size = 0x4000, scoped, tag = 'input window, operand 1']
    #allocation6 [shape = 's32[2]{0}', space=sflag, size = 0x8, scoped, tag = 'scoped memory for tpu_custom_call.1']
    #allocation7 [shape = 'u8[16384]{0}', space=vmem, size = 0x4000, scoped, tag = 'input window, operand 2']
    #allocation8 [shape = 'u8[16384]{0}', space=vmem, size = 0x4000, scoped, tag = 'input window, operand 3']
    #allocation9 [shape = 's32[2]{0}', space=sflag, size = 0x8, scoped, tag = 'scoped memory for tpu_custom_call.1']
    #allocation10 [shape = 'u8[1024]{0}', space=vmem, size = 0x400, scoped, tag = 'output window, operand 0']
    %9 = vsyncpa [#allocation3], 0
    %10 = vsyncpa [#allocation6], 0
    %s11 = scalar_lea.sflag [#allocation6], 1
    %12 = vsyncpa %s11, 0
    %13 = vsyncpa [#allocation9], 0
    %s14 = scalar_lea.sflag [#allocation9], 1
    %15 = vsyncpa %s14, 0
    %16 = vsyncpa [#allocation4], 0
    %s17 = scalar_lea.sflag [#allocation4], 1
    %18 = vsyncpa %s17, 0
    loop: start=0, step=1, limit=4
    $region2: #{tpu_custom_call.1} parent=1 // loop_pre_header
      _
    $region3: #{tpu_custom_call.1} parent=1 // loop_header
      %s20 = sphi 0, %s24
      %p21 = scmp.ge.s32.totalorder %s20, 4
      %s28 = sphi 0, %s28
      %s30 = sphi 0, %s28
      %s31 = sphi 0, %s30
      %s45 = sphi 0, %s31
      %s51 = sphi 0, %s53
      %s54 = sphi 0, %s51
      %s55 = sphi 0, %s54
      %s71 = sphi 0, %s55
      %s77 = sphi 0, %s79
      %s80 = sphi 0, %s77
      %s81 = sphi 0, %s80
      %s97 = sphi 0, %s81
      %s103 = sphi 0, %s105
      %s106 = sphi 0, %s103
      %s107 = sphi 0, %s106
      %s123 = sphi 0, %s107
      %s129 = sphi 0, %s131
      %s132 = sphi 0, %s129
      %s133 = sphi 0, %s132
      %s149 = sphi 0, %s133
    $region4: #{tpu_custom_call.1} parent=1 // loop_header_branch
      %23 = sbr.rel (%p21) target = $region8
    $region5: #{tpu_custom_call.1} parent=1 // loop_body
      %s25 = ssub.s32 %s20, 1
      %s26 = ssub.s32 %s20, 2
      %s27 = sadd.s32 %s20, 1
      %s29 = sadd.s32 %s28, 1
      %p32 = scmp.eq.s32.totalorder %s20, 1
      %p33 = scmp.ne.s32.totalorder %s28, %s30
      %p34 = scmp.eq.s32.totalorder %s20, 0
      %p35 = por %p33, %p34
      %p36 = scmp.ne.s32.totalorder %s28, %s30
      %p37 = scmp.eq.s32.totalorder %s25, 1
      %p38 = por %p36, %p37
      %p39 = scmp.ne.s32.totalorder %s30, %s31
      %p40 = scmp.eq.s32.totalorder %s25, 0
      %p41 = por %p39, %p40
      %p42 = scmp.ne.s32.totalorder %s30, %s31
      %p43 = scmp.eq.s32.totalorder %s26, 1
      %p44 = por %p42, %p43
      %p46 = scmp.ne.s32.totalorder %s31, %s45
      %p47 = scmp.eq.s32.totalorder %s26, 0
      %p48 = por %p46, %p47
      %s49 = ssub.s32 %s20, %s27
      %p50 = scmp.eq.s32.totalorder %s49, 0
      %s52 = sadd.s32 %s51, 1
      %s53 = scalar_select %p50, %s51, %s52
      %p56 = pneg %p50
      %p57 = scmp.eq.s32.totalorder %s20, 1
      %p58 = por %p56, %p57
      %p59 = scmp.ne.s32.totalorder %s51, %s54
      %p60 = scmp.eq.s32.totalorder %s20, 0
      %p61 = por %p59, %p60
      %p62 = scmp.ne.s32.totalorder %s51, %s54
      %p63 = scmp.eq.s32.totalorder %s25, 1
      %p64 = por %p62, %p63
      %p65 = scmp.ne.s32.totalorder %s54, %s55
      %p66 = scmp.eq.s32.totalorder %s25, 0
      %p67 = por %p65, %p66
      %p68 = scmp.ne.s32.totalorder %s54, %s55
      %p69 = scmp.eq.s32.totalorder %s26, 1
      %p70 = por %p68, %p69
      %p72 = scmp.ne.s32.totalorder %s55, %s71
      %p73 = scmp.eq.s32.totalorder %s26, 0
      %p74 = por %p72, %p73
      %s75 = ssub.s32 %s20, %s27
      %p76 = scmp.eq.s32.totalorder %s75, 0
      %s78 = sadd.s32 %s77, 1
      %s79 = scalar_select %p76, %s77, %s78
      %p82 = pneg %p76
      %p83 = scmp.eq.s32.totalorder %s20, 1
      %p84 = por %p82, %p83
      %p85 = scmp.ne.s32.totalorder %s77, %s80
      %p86 = scmp.eq.s32.totalorder %s20, 0
      %p87 = por %p85, %p86
      %p88 = scmp.ne.s32.totalorder %s77, %s80
      %p89 = scmp.eq.s32.totalorder %s25, 1
      %p90 = por %p88, %p89
      %p91 = scmp.ne.s32.totalorder %s80, %s81
      %p92 = scmp.eq.s32.totalorder %s25, 0
      %p93 = por %p91, %p92
      %p94 = scmp.ne.s32.totalorder %s80, %s81
      %p95 = scmp.eq.s32.totalorder %s26, 1
      %p96 = por %p94, %p95
      %p98 = scmp.ne.s32.totalorder %s81, %s97
      %p99 = scmp.eq.s32.totalorder %s26, 0
      %p100 = por %p98, %p99
      %s101 = ssub.s32 %s20, %s27
      %p102 = scmp.eq.s32.totalorder %s101, 0
      %s104 = sadd.s32 %s103, 1
      %s105 = scalar_select %p102, %s103, %s104
      %p108 = pneg %p102
      %p109 = scmp.eq.s32.totalorder %s20, 1
      %p110 = por %p108, %p109
      %p111 = scmp.ne.s32.totalorder %s103, %s106
      %p112 = scmp.eq.s32.totalorder %s20, 0
      %p113 = por %p111, %p112
      %p114 = scmp.ne.s32.totalorder %s103, %s106
      %p115 = scmp.eq.s32.totalorder %s25, 1
      %p116 = por %p114, %p115
      %p117 = scmp.ne.s32.totalorder %s106, %s107
      %p118 = scmp.eq.s32.totalorder %s25, 0
      %p119 = por %p117, %p118
      %p120 = scmp.ne.s32.totalorder %s106, %s107
      %p121 = scmp.eq.s32.totalorder %s26, 1
      %p122 = por %p120, %p121
      %p124 = scmp.ne.s32.totalorder %s107, %s123
      %p125 = scmp.eq.s32.totalorder %s26, 0
      %p126 = por %p124, %p125
      %s127 = ssub.s32 %s20, %s27
      %p128 = scmp.eq.s32.totalorder %s127, 0
      %s130 = sadd.s32 %s129, 1
      %s131 = scalar_select %p128, %s129, %s130
      %p134 = pneg %p128
      %p135 = scmp.eq.s32.totalorder %s20, 1
      %p136 = por %p134, %p135
      %p137 = scmp.ne.s32.totalorder %s129, %s132
      %p138 = scmp.eq.s32.totalorder %s20, 0
      %p139 = por %p137, %p138
      %p140 = scmp.ne.s32.totalorder %s129, %s132
      %p141 = scmp.eq.s32.totalorder %s25, 1
      %p142 = por %p140, %p141
      %p143 = scmp.ne.s32.totalorder %s132, %s133
      %p144 = scmp.eq.s32.totalorder %s25, 0
      %p145 = por %p143, %p144
      %p146 = scmp.ne.s32.totalorder %s132, %s133
      %p147 = scmp.eq.s32.totalorder %s26, 1
      %p148 = por %p146, %p147
      %p150 = scmp.ne.s32.totalorder %s133, %s149
      %p151 = scmp.eq.s32.totalorder %s26, 0
      %p152 = por %p150, %p151
      %p153 = scmp.le.s32.totalorder 1, %s20
      %p154 = scmp.lt.s32.totalorder %s20, 3
      %p155 = pnand %p153, %p154
      %p156 = pneg %p155
      // Predicated region
      $region9: #{tpu_custom_call.1} parent=5 // pred_check
        _
      $region10: #{tpu_custom_call.1} parent=5 // pred_check_branch
        %158 = sbr.rel (%p155) target = $region12
      $region11: #{tpu_custom_call.1} parent=5 // pred_region
        %s159 = ssub.s32 %s20, 1
        // Predicated region
        $region13: #{tpu_custom_call.1} parent=11 // pred_check
          %p160 = pneg %p41
        $region14: #{tpu_custom_call.1} parent=11 // pred_check_branch
          %162 = sbr.rel (%p160) target = $region16
        $region15: #{tpu_custom_call.1} parent=11 // pred_region
          %164 = vsyncadd [#allocation3], 0
          %s166 = sshll.u32 %s0, 4
          %s167 = int_to_ptr.hbm [resolvable:$true] %s166
          %s168 = sshll.u32 [#allocation2], 4
          %s169 = int_to_ptr.vmem [resolvable:$true] %s168
          %171 = dma.hbm_to_vmem [thread:$0]  %s167, 128, %s169, [#allocation3]
        $region16: #{tpu_custom_call.1} parent=11 // pred_fallthru
          _
      $region12: #{tpu_custom_call.1} parent=5 // pred_fallthru
        _
      %p172 = scmp.lt.s32.totalorder %s20, 2
      // Predicated region
      $region17: #{tpu_custom_call.1} parent=5 // pred_check
        %p173 = pneg %p172
      $region18: #{tpu_custom_call.1} parent=5 // pred_check_branch
        %175 = sbr.rel (%p173) target = $region20
      $region19: #{tpu_custom_call.1} parent=5 // pred_region
        // Predicated region
        $region21: #{tpu_custom_call.1} parent=19 // pred_check
          %p176 = pneg %p61
        $region22: #{tpu_custom_call.1} parent=19 // pred_check_branch
          %178 = sbr.rel (%p176) target = $region24
        $region23: #{tpu_custom_call.1} parent=19 // pred_region
          %s179 = sand.u32 %s20, 1
          %s180 = scalar_lea.sflag [#allocation6], %s179
          %s181 = sand.u32 %s51, 1
          %s182 = smul.addr %s181, 16
          %s183 = scalar_lea.vmem [#allocation5], %s182
          %s184 = smul.u32 2, %s20
          %186 = vsyncadd %s180, 0
          %s187 = smul.addr %s184, 8
          %s188 = scalar_lea.hbm %s1, %s187
          %s189 = sshll.u32 %s188, 4
          %s190 = int_to_ptr.hbm [resolvable:$true] %s189
          %s191 = sshll.u32 %s183, 4
          %s192 = int_to_ptr.vmem [resolvable:$true] %s191
          %197 = dma.hbm_to_vmem [thread:$0]  %s190, 256, %s192, %s180, 128, 128, 8
        $region24: #{tpu_custom_call.1} parent=19 // pred_fallthru
          _
        // Predicated region
        $region25: #{tpu_custom_call.1} parent=19 // pred_check
          %p198 = pneg %p87
        $region26: #{tpu_custom_call.1} parent=19 // pred_check_branch
          %200 = sbr.rel (%p198) target = $region28
        $region27: #{tpu_custom_call.1} parent=19 // pred_region
          %s201 = sand.u32 %s20, 1
          %s202 = scalar_lea.sflag [#allocation6], %s201
          %s203 = sand.u32 %s77, 1
          %s204 = smul.addr %s203, 16
          %s205 = scalar_lea.vmem [#allocation7], %s204
          %s206 = smul.u32 2, %s20
          %208 = vsyncadd %s202, 0
          %s209 = smul.addr %s206, 8
          %s210 = scalar_lea.hbm %s2, %s209
          %s211 = sshll.u32 %s210, 4
          %s212 = int_to_ptr.hbm [resolvable:$true] %s211
          %s213 = sshll.u32 %s205, 4
          %s214 = int_to_ptr.vmem [resolvable:$true] %s213
          %219 = dma.hbm_to_vmem [thread:$0]  %s212, 256, %s214, %s202, 128, 128, 8
        $region28: #{tpu_custom_call.1} parent=19 // pred_fallthru
          _
        // Predicated region
        $region29: #{tpu_custom_call.1} parent=19 // pred_check
          %p220 = pneg %p113
        $region30: #{tpu_custom_call.1} parent=19 // pred_check_branch
          %222 = sbr.rel (%p220) target = $region32
        $region31: #{tpu_custom_call.1} parent=19 // pred_region
          %s223 = sand.u32 %s103, 1
          %s224 = scalar_lea.sflag [#allocation9], %s223
          %s225 = sand.u32 %s103, 1
          %s226 = smul.addr %s225, 16
          %s227 = scalar_lea.vmem [#allocation8], %s226
          %s228 = smul.u32 2, %s20
          %230 = vsyncadd %s224, 0
          %s231 = smul.addr %s228, 8
          %s232 = scalar_lea.hbm %s3, %s231
          %s233 = sshll.u32 %s232, 4
          %s234 = int_to_ptr.hbm [resolvable:$true] %s233
          %s235 = sshll.u32 %s227, 4
          %s236 = int_to_ptr.vmem [resolvable:$true] %s235
          %241 = dma.hbm_to_vmem [thread:$0]  %s234, 256, %s236, %s224, 128, 128, 8
        $region32: #{tpu_custom_call.1} parent=19 // pred_fallthru
          _
      $region20: #{tpu_custom_call.1} parent=5 // pred_fallthru
        _
      %p242 = scmp.le.s32.totalorder 1, %s20
      %p243 = scmp.lt.s32.totalorder %s20, 3
      %p244 = pnand %p242, %p243
      %p245 = pneg %p244
      // Predicated region
      $region33: #{tpu_custom_call.1} parent=5 // pred_check
        _
      $region34: #{tpu_custom_call.1} parent=5 // pred_check_branch
        %247 = sbr.rel (%p244) target = $region36
      $region35: #{tpu_custom_call.1} parent=5 // pred_region
        %s248 = ssub.s32 %s20, 1
        // Predicated region
        $region37: #{tpu_custom_call.1} parent=35 // pred_check
          %p249 = pneg %p41
        $region38: #{tpu_custom_call.1} parent=35 // pred_check_branch
          %251 = sbr.rel (%p249) target = $region40
        $region39: #{tpu_custom_call.1} parent=35 // pred_region
          %253 = dma.done [#allocation3], 128
        $region40: #{tpu_custom_call.1} parent=35 // pred_fallthru
          _
        %s254 = sand.u32 %s25, 1
        %s255 = scalar_lea.sflag [#allocation6], %s254
        %s256 = sand.u32 %s54, 1
        %s257 = smul.addr %s256, 16
        %s258 = scalar_lea.vmem [#allocation5], %s257
        // Predicated region
        $region41: #{tpu_custom_call.1} parent=35 // pred_check
          %p259 = pneg %p67
        $region42: #{tpu_custom_call.1} parent=35 // pred_check_branch
          %261 = sbr.rel (%p259) target = $region44
        $region43: #{tpu_custom_call.1} parent=35 // pred_region
          %263 = dma.done %s255, 256
        $region44: #{tpu_custom_call.1} parent=35 // pred_fallthru
          _
        %s264 = sand.u32 %s25, 1
        %s265 = scalar_lea.sflag [#allocation6], %s264
        %s266 = sand.u32 %s80, 1
        %s267 = smul.addr %s266, 16
        %s268 = scalar_lea.vmem [#allocation7], %s267
        // Predicated region
        $region45: #{tpu_custom_call.1} parent=35 // pred_check
          %p269 = pneg %p93
        $region46: #{tpu_custom_call.1} parent=35 // pred_check_branch
          %271 = sbr.rel (%p269) target = $region48
        $region47: #{tpu_custom_call.1} parent=35 // pred_region
          %273 = dma.done %s265, 256
        $region48: #{tpu_custom_call.1} parent=35 // pred_fallthru
          _
        %s274 = sand.u32 %s106, 1
        %s275 = scalar_lea.sflag [#allocation9], %s274
        %s276 = sand.u32 %s106, 1
        %s277 = smul.addr %s276, 16
        %s278 = scalar_lea.vmem [#allocation8], %s277
        // Predicated region
        $region49: #{tpu_custom_call.1} parent=35 // pred_check
          %p279 = pneg %p119
        $region50: #{tpu_custom_call.1} parent=35 // pred_check_branch
          %281 = sbr.rel (%p279) target = $region52
        $region51: #{tpu_custom_call.1} parent=35 // pred_region
          %283 = dma.done %s275, 256
        $region52: #{tpu_custom_call.1} parent=35 // pred_fallthru
          _
        %p284 = pneg %p41
        %p285 = pneg %p38
        %s286 = sand.u32 %s25, 1
        %s287 = scalar_lea.sflag [#allocation6], %s286
        %s288 = sand.u32 %s54, 1
        %s289 = smul.addr %s288, 16
        %s290 = scalar_lea.vmem [#allocation5], %s289
        %p291 = pneg %p67
        %p292 = pneg %p64
        %s293 = sand.u32 %s25, 1
        %s294 = scalar_lea.sflag [#allocation6], %s293
        %s295 = sand.u32 %s80, 1
        %s296 = smul.addr %s295, 16
        %s297 = scalar_lea.vmem [#allocation7], %s296
        %p298 = pneg %p93
        %p299 = pneg %p90
        %s300 = sand.u32 %s106, 1
        %s301 = scalar_lea.sflag [#allocation9], %s300
        %s302 = sand.u32 %s106, 1
        %s303 = smul.addr %s302, 16
        %s304 = scalar_lea.vmem [#allocation8], %s303
        %p305 = pneg %p119
        %p306 = pneg %p116
        %p307 = pneg %p145
        %p308 = pneg %p142
        %s309 = sand.u32 %s132, 1
        %s310 = scalar_lea.sflag [#allocation4], %s309
        %s311 = sand.u32 %s132, 1
        %s312 = scalar_lea.vmem [#allocation10], %s311
        %s313 = smul.u32 2, %s25
        %s314 = smul.u32 2, %s25
        %s315 = smul.u32 2, %s25
        %v316 = vld [vmem:[%s258] sm:$0xff]
        %v317 = vld [vmem:[%s258 + $0x8] sm:$0xff]
        %v318 = vld [vmem:[%s268] sm:$0xff]
        %v319 = vld [vmem:[%s268 + $0x8] sm:$0xff]
        %v320 = vld [vmem:[%s278] sm:$0xff]
        %v321 = vld [vmem:[%s278 + $0x8] sm:$0xff]
        %v322 = vld [vmem:[#allocation2] sm:$0xff]
        %v325 = vrot.slane %v316, 1
        %v326 = vrot.slane %v316, 2
        %v327 = vrot.slane %v316, 3
        %v328 = vrot.slane %v316, 4
        %v329 = vrot.slane %v316, 5
        %v330 = vrot.slane %v316, 6
        %v331 = vrot.slane %v316, 7
        %v332 = vrot.slane %v317, 1
        %v333 = vrot.slane %v317, 2
        %v334 = vrot.slane %v317, 3
        %v335 = vrot.slane %v317, 4
        %v336 = vrot.slane %v317, 5
        %v337 = vrot.slane %v317, 6
        %v338 = vrot.slane %v317, 7
        %v339 = vperm.slane %v316, 0
        %v340 = vlaneseq
        %v341 = vshrl.u32 %v340, 7
        %343 = vset.pattern.permute.xlu0 %v341
        %344 = vperm.xlu0 %343, %v339
        %v345 = vpop.permute.xlu0 %344
        %v346 = vperm.slane %v316, 1
        %v347 = vlaneseq
        %v348 = vshrl.u32 %v347, 7
        %350 = vset.pattern.permute.xlu0 %v348
        %351 = vperm.xlu0 %350, %v346
        %v352 = vpop.permute.xlu0 %351
        %v353 = vperm.slane %v316, 2
        %v354 = vlaneseq
        %v355 = vshrl.u32 %v354, 7
        %357 = vset.pattern.permute.xlu0 %v355
        %358 = vperm.xlu0 %357, %v353
        %v359 = vpop.permute.xlu0 %358
        %v360 = vperm.slane %v316, 3
        %v361 = vlaneseq
        %v362 = vshrl.u32 %v361, 7
        %364 = vset.pattern.permute.xlu0 %v362
        %365 = vperm.xlu0 %364, %v360
        %v366 = vpop.permute.xlu0 %365
        %v367 = vperm.slane %v316, 4
        %v368 = vlaneseq
        %v369 = vshrl.u32 %v368, 7
        %371 = vset.pattern.permute.xlu0 %v369
        %372 = vperm.xlu0 %371, %v367
        %v373 = vpop.permute.xlu0 %372
        %v374 = vperm.slane %v316, 5
        %v375 = vlaneseq
        %v376 = vshrl.u32 %v375, 7
        %378 = vset.pattern.permute.xlu0 %v376
        %379 = vperm.xlu0 %378, %v374
        %v380 = vpop.permute.xlu0 %379
        %v381 = vperm.slane %v316, 6
        %v382 = vlaneseq
        %v383 = vshrl.u32 %v382, 7
        %385 = vset.pattern.permute.xlu0 %v383
        %386 = vperm.xlu0 %385, %v381
        %v387 = vpop.permute.xlu0 %386
        %v388 = vperm.slane %v316, 7
        %v389 = vlaneseq
        %v390 = vshrl.u32 %v389, 7
        %392 = vset.pattern.permute.xlu0 %v390
        %393 = vperm.xlu0 %392, %v388
        %v394 = vpop.permute.xlu0 %393
        %v395 = vperm.slane %v317, 0
        %v396 = vlaneseq
        %v397 = vshrl.u32 %v396, 7
        %399 = vset.pattern.permute.xlu0 %v397
        %400 = vperm.xlu0 %399, %v395
        %v401 = vpop.permute.xlu0 %400
        %v402 = vperm.slane %v317, 1
        %v403 = vlaneseq
        %v404 = vshrl.u32 %v403, 7
        %406 = vset.pattern.permute.xlu0 %v404
        %407 = vperm.xlu0 %406, %v402
        %v408 = vpop.permute.xlu0 %407
        %v409 = vperm.slane %v317, 2
        %v410 = vlaneseq
        %v411 = vshrl.u32 %v410, 7
        %413 = vset.pattern.permute.xlu0 %v411
        %414 = vperm.xlu0 %413, %v409
        %v415 = vpop.permute.xlu0 %414
        %v416 = vperm.slane %v317, 3
        %v417 = vlaneseq
        %v418 = vshrl.u32 %v417, 7
        %420 = vset.pattern.permute.xlu0 %v418
        %421 = vperm.xlu0 %420, %v416
        %v422 = vpop.permute.xlu0 %421
        %v423 = vperm.slane %v317, 4
        %v424 = vlaneseq
        %v425 = vshrl.u32 %v424, 7
        %427 = vset.pattern.permute.xlu0 %v425
        %428 = vperm.xlu0 %427, %v423
        %v429 = vpop.permute.xlu0 %428
        %v430 = vperm.slane %v317, 5
        %v431 = vlaneseq
        %v432 = vshrl.u32 %v431, 7
        %434 = vset.pattern.permute.xlu0 %v432
        %435 = vperm.xlu0 %434, %v430
        %v436 = vpop.permute.xlu0 %435
        %v437 = vperm.slane %v317, 6
        %v438 = vlaneseq
        %v439 = vshrl.u32 %v438, 7
        %441 = vset.pattern.permute.xlu0 %v439
        %442 = vperm.xlu0 %441, %v437
        %v443 = vpop.permute.xlu0 %442
        %v444 = vperm.slane %v317, 7
        %v445 = vlaneseq
        %v446 = vshrl.u32 %v445, 7
        %448 = vset.pattern.permute.xlu0 %v446
        %449 = vperm.xlu0 %448, %v444
        %v450 = vpop.permute.xlu0 %449
        %v451 = vperm.slane %v316, 0
        %v452 = vperm.slane %v325, 0
        %v453 = vperm.slane %v326, 0
        %v454 = vperm.slane %v327, 0
        %v455 = vperm.slane %v328, 0
        %v456 = vperm.slane %v329, 0
        %v457 = vperm.slane %v330, 0
        %v458 = vperm.slane %v331, 0
        %v459 = vperm.slane %v317, 0
        %v460 = vperm.slane %v332, 0
        %v461 = vperm.slane %v333, 0
        %v462 = vperm.slane %v334, 0
        %v463 = vperm.slane %v335, 0
        %v464 = vperm.slane %v336, 0
        %v465 = vperm.slane %v337, 0
        %v466 = vperm.slane %v338, 0
        %v483 = vsub.f32 %v451, %v345
        %v484 = vsub.f32 %v452, %v352
        %v485 = vsub.f32 %v453, %v359
        %v486 = vsub.f32 %v454, %v366
        %v487 = vsub.f32 %v455, %v373
        %v488 = vsub.f32 %v456, %v380
        %v489 = vsub.f32 %v457, %v387
        %v490 = vsub.f32 %v458, %v394
        %v491 = vsub.f32 %v459, %v401
        %v492 = vsub.f32 %v460, %v408
        %v493 = vsub.f32 %v461, %v415
        %v494 = vsub.f32 %v462, %v422
        %v495 = vsub.f32 %v463, %v429
        %v496 = vsub.f32 %v464, %v436
        %v497 = vsub.f32 %v465, %v443
        %v498 = vsub.f32 %v466, %v450
        %v501 = vrot.slane %v318, 1
        %v502 = vrot.slane %v318, 2
        %v503 = vrot.slane %v318, 3
        %v504 = vrot.slane %v318, 4
        %v505 = vrot.slane %v318, 5
        %v506 = vrot.slane %v318, 6
        %v507 = vrot.slane %v318, 7
        %v508 = vrot.slane %v319, 1
        %v509 = vrot.slane %v319, 2
        %v510 = vrot.slane %v319, 3
        %v511 = vrot.slane %v319, 4
        %v512 = vrot.slane %v319, 5
        %v513 = vrot.slane %v319, 6
        %v514 = vrot.slane %v319, 7
        %v515 = vperm.slane %v318, 0
        %v516 = vlaneseq
        %v517 = vshrl.u32 %v516, 7
        %519 = vset.pattern.permute.xlu0 %v517
        %520 = vperm.xlu0 %519, %v515
        %v521 = vpop.permute.xlu0 %520
        %v522 = vperm.slane %v318, 1
        %v523 = vlaneseq
        %v524 = vshrl.u32 %v523, 7
        %526 = vset.pattern.permute.xlu0 %v524
        %527 = vperm.xlu0 %526, %v522
        %v528 = vpop.permute.xlu0 %527
        %v529 = vperm.slane %v318, 2
        %v530 = vlaneseq
        %v531 = vshrl.u32 %v530, 7
        %533 = vset.pattern.permute.xlu0 %v531
        %534 = vperm.xlu0 %533, %v529
        %v535 = vpop.permute.xlu0 %534
        %v536 = vperm.slane %v318, 3
        %v537 = vlaneseq
        %v538 = vshrl.u32 %v537, 7
        %540 = vset.pattern.permute.xlu0 %v538
        %541 = vperm.xlu0 %540, %v536
        %v542 = vpop.permute.xlu0 %541
        %v543 = vperm.slane %v318, 4
        %v544 = vlaneseq
        %v545 = vshrl.u32 %v544, 7
        %547 = vset.pattern.permute.xlu0 %v545
        %548 = vperm.xlu0 %547, %v543
        %v549 = vpop.permute.xlu0 %548
        %v550 = vperm.slane %v318, 5
        %v551 = vlaneseq
        %v552 = vshrl.u32 %v551, 7
        %554 = vset.pattern.permute.xlu0 %v552
        %555 = vperm.xlu0 %554, %v550
        %v556 = vpop.permute.xlu0 %555
        %v557 = vperm.slane %v318, 6
        %v558 = vlaneseq
        %v559 = vshrl.u32 %v558, 7
        %561 = vset.pattern.permute.xlu0 %v559
        %562 = vperm.xlu0 %561, %v557
        %v563 = vpop.permute.xlu0 %562
        %v564 = vperm.slane %v318, 7
        %v565 = vlaneseq
        %v566 = vshrl.u32 %v565, 7
        %568 = vset.pattern.permute.xlu0 %v566
        %569 = vperm.xlu0 %568, %v564
        %v570 = vpop.permute.xlu0 %569
        %v571 = vperm.slane %v319, 0
        %v572 = vlaneseq
        %v573 = vshrl.u32 %v572, 7
        %575 = vset.pattern.permute.xlu0 %v573
        %576 = vperm.xlu0 %575, %v571
        %v577 = vpop.permute.xlu0 %576
        %v578 = vperm.slane %v319, 1
        %v579 = vlaneseq
        %v580 = vshrl.u32 %v579, 7
        %582 = vset.pattern.permute.xlu0 %v580
        %583 = vperm.xlu0 %582, %v578
        %v584 = vpop.permute.xlu0 %583
        %v585 = vperm.slane %v319, 2
        %v586 = vlaneseq
        %v587 = vshrl.u32 %v586, 7
        %589 = vset.pattern.permute.xlu0 %v587
        %590 = vperm.xlu0 %589, %v585
        %v591 = vpop.permute.xlu0 %590
        %v592 = vperm.slane %v319, 3
        %v593 = vlaneseq
        %v594 = vshrl.u32 %v593, 7
        %596 = vset.pattern.permute.xlu0 %v594
        %597 = vperm.xlu0 %596, %v592
        %v598 = vpop.permute.xlu0 %597
        %v599 = vperm.slane %v319, 4
        %v600 = vlaneseq
        %v601 = vshrl.u32 %v600, 7
        %603 = vset.pattern.permute.xlu0 %v601
        %604 = vperm.xlu0 %603, %v599
        %v605 = vpop.permute.xlu0 %604
        %v606 = vperm.slane %v319, 5
        %v607 = vlaneseq
        %v608 = vshrl.u32 %v607, 7
        %610 = vset.pattern.permute.xlu0 %v608
        %611 = vperm.xlu0 %610, %v606
        %v612 = vpop.permute.xlu0 %611
        %v613 = vperm.slane %v319, 6
        %v614 = vlaneseq
        %v615 = vshrl.u32 %v614, 7
        %617 = vset.pattern.permute.xlu0 %v615
        %618 = vperm.xlu0 %617, %v613
        %v619 = vpop.permute.xlu0 %618
        %v620 = vperm.slane %v319, 7
        %v621 = vlaneseq
        %v622 = vshrl.u32 %v621, 7
        %624 = vset.pattern.permute.xlu0 %v622
        %625 = vperm.xlu0 %624, %v620
        %v626 = vpop.permute.xlu0 %625
        %v627 = vperm.slane %v318, 0
        %v628 = vperm.slane %v501, 0
        %v629 = vperm.slane %v502, 0
        %v630 = vperm.slane %v503, 0
        %v631 = vperm.slane %v504, 0
        %v632 = vperm.slane %v505, 0
        %v633 = vperm.slane %v506, 0
        %v634 = vperm.slane %v507, 0
        %v635 = vperm.slane %v319, 0
        %v636 = vperm.slane %v508, 0
        %v637 = vperm.slane %v509, 0
        %v638 = vperm.slane %v510, 0
        %v639 = vperm.slane %v511, 0
        %v640 = vperm.slane %v512, 0
        %v641 = vperm.slane %v513, 0
        %v642 = vperm.slane %v514, 0
        %v659 = vmul.f32 %v627, %v521
        %v660 = vmul.f32 %v628, %v528
        %v661 = vmul.f32 %v629, %v535
        %v662 = vmul.f32 %v630, %v542
        %v663 = vmul.f32 %v631, %v549
        %v664 = vmul.f32 %v632, %v556
        %v665 = vmul.f32 %v633, %v563
        %v666 = vmul.f32 %v634, %v570
        %v667 = vmul.f32 %v635, %v577
        %v668 = vmul.f32 %v636, %v584
        %v669 = vmul.f32 %v637, %v591
        %v670 = vmul.f32 %v638, %v598
        %v671 = vmul.f32 %v639, %v605
        %v672 = vmul.f32 %v640, %v612
        %v673 = vmul.f32 %v641, %v619
        %v674 = vmul.f32 %v642, %v626
        %v677 = vrot.slane %v320, 1
        %v678 = vrot.slane %v320, 2
        %v679 = vrot.slane %v320, 3
        %v680 = vrot.slane %v320, 4
        %v681 = vrot.slane %v320, 5
        %v682 = vrot.slane %v320, 6
        %v683 = vrot.slane %v320, 7
        %v684 = vrot.slane %v321, 1
        %v685 = vrot.slane %v321, 2
        %v686 = vrot.slane %v321, 3
        %v687 = vrot.slane %v321, 4
        %v688 = vrot.slane %v321, 5
        %v689 = vrot.slane %v321, 6
        %v690 = vrot.slane %v321, 7
        %v691 = vperm.slane %v320, 0
        %v692 = vperm.slane %v677, 0
        %v693 = vperm.slane %v678, 0
        %v694 = vperm.slane %v679, 0
        %v695 = vperm.slane %v680, 0
        %v696 = vperm.slane %v681, 0
        %v697 = vperm.slane %v682, 0
        %v698 = vperm.slane %v683, 0
        %v699 = vperm.slane %v321, 0
        %v700 = vperm.slane %v684, 0
        %v701 = vperm.slane %v685, 0
        %v702 = vperm.slane %v686, 0
        %v703 = vperm.slane %v687, 0
        %v704 = vperm.slane %v688, 0
        %v705 = vperm.slane %v689, 0
        %v706 = vperm.slane %v690, 0
        %v723 = vmul.f32 %v691, %v521
        %v724 = vmul.f32 %v692, %v528
        %v725 = vmul.f32 %v693, %v535
        %v726 = vmul.f32 %v694, %v542
        %v727 = vmul.f32 %v695, %v549
        %v728 = vmul.f32 %v696, %v556
        %v729 = vmul.f32 %v697, %v563
        %v730 = vmul.f32 %v698, %v570
        %v731 = vmul.f32 %v699, %v577
        %v732 = vmul.f32 %v700, %v584
        %v733 = vmul.f32 %v701, %v591
        %v734 = vmul.f32 %v702, %v598
        %v735 = vmul.f32 %v703, %v605
        %v736 = vmul.f32 %v704, %v612
        %v737 = vmul.f32 %v705, %v619
        %v738 = vmul.f32 %v706, %v626
        %vm739 = vcmp.gt.f32.partialorder %v483, 0.0
        %vm740 = vcmp.gt.f32.partialorder %v484, 0.0
        %vm741 = vcmp.gt.f32.partialorder %v485, 0.0
        %vm742 = vcmp.gt.f32.partialorder %v486, 0.0
        %vm743 = vcmp.gt.f32.partialorder %v487, 0.0
        %vm744 = vcmp.gt.f32.partialorder %v488, 0.0
        %vm745 = vcmp.gt.f32.partialorder %v489, 0.0
        %vm746 = vcmp.gt.f32.partialorder %v490, 0.0
        %vm747 = vcmp.gt.f32.partialorder %v491, 0.0
        %vm748 = vcmp.gt.f32.partialorder %v492, 0.0
        %vm749 = vcmp.gt.f32.partialorder %v493, 0.0
        %vm750 = vcmp.gt.f32.partialorder %v494, 0.0
        %vm751 = vcmp.gt.f32.partialorder %v495, 0.0
        %vm752 = vcmp.gt.f32.partialorder %v496, 0.0
        %vm753 = vcmp.gt.f32.partialorder %v497, 0.0
        %vm754 = vcmp.gt.f32.partialorder %v498, 0.0
        %v755 = vsel %vm739, 1, 0
        %v756 = vsel %vm740, 1, 0
        %v757 = vsel %vm741, 1, 0
        %v758 = vsel %vm742, 1, 0
        %v759 = vsel %vm743, 1, 0
        %v760 = vsel %vm744, 1, 0
        %v761 = vsel %vm745, 1, 0
        %v762 = vsel %vm746, 1, 0
        %v763 = vsel %vm747, 1, 0
        %v764 = vsel %vm748, 1, 0
        %v765 = vsel %vm749, 1, 0
        %v766 = vsel %vm750, 1, 0
        %v767 = vsel %vm751, 1, 0
        %v768 = vsel %vm752, 1, 0
        %v769 = vsel %vm753, 1, 0
        %v770 = vsel %vm754, 1, 0
        %v771 = vcvt.s32.f32 %v755
        %v772 = vcvt.s32.f32 %v756
        %v773 = vcvt.s32.f32 %v757
        %v774 = vcvt.s32.f32 %v758
        %v775 = vcvt.s32.f32 %v759
        %v776 = vcvt.s32.f32 %v760
        %v777 = vcvt.s32.f32 %v761
        %v778 = vcvt.s32.f32 %v762
        %v779 = vcvt.s32.f32 %v763
        %v780 = vcvt.s32.f32 %v764
        %v781 = vcvt.s32.f32 %v765
        %v782 = vcvt.s32.f32 %v766
        %v783 = vcvt.s32.f32 %v767
        %v784 = vcvt.s32.f32 %v768
        %v785 = vcvt.s32.f32 %v769
        %v786 = vcvt.s32.f32 %v770
        %v787 = vmul.f32 %v483, 10.0
        %v788 = vmul.f32 %v484, 10.0
        %v789 = vmul.f32 %v485, 10.0
        %v790 = vmul.f32 %v486, 10.0
        %v791 = vmul.f32 %v487, 10.0
        %v792 = vmul.f32 %v488, 10.0
        %v793 = vmul.f32 %v489, 10.0
        %v794 = vmul.f32 %v490, 10.0
        %v795 = vmul.f32 %v491, 10.0
        %v796 = vmul.f32 %v492, 10.0
        %v797 = vmul.f32 %v493, 10.0
        %v798 = vmul.f32 %v494, 10.0
        %v799 = vmul.f32 %v495, 10.0
        %v800 = vmul.f32 %v496, 10.0
        %v801 = vmul.f32 %v497, 10.0
        %v802 = vmul.f32 %v498, 10.0
        %v803 = vmul.f32 %v787, 2.0
        %v804 = vmul.f32 %v788, 2.0
        %v805 = vmul.f32 %v789, 2.0
        %v806 = vmul.f32 %v790, 2.0
        %v807 = vmul.f32 %v791, 2.0
        %v808 = vmul.f32 %v792, 2.0
        %v809 = vmul.f32 %v793, 2.0
        %v810 = vmul.f32 %v794, 2.0
        %v811 = vmul.f32 %v795, 2.0
        %v812 = vmul.f32 %v796, 2.0
        %v813 = vmul.f32 %v797, 2.0
        %v814 = vmul.f32 %v798, 2.0
        %v815 = vmul.f32 %v799, 2.0
        %v816 = vmul.f32 %v800, 2.0
        %v817 = vmul.f32 %v801, 2.0
        %v818 = vmul.f32 %v802, 2.0
        %v819 = vadd.f32 %v803, 1.0
        %v820 = vadd.f32 %v804, 1.0
        %v821 = vadd.f32 %v805, 1.0
        %v822 = vadd.f32 %v806, 1.0
        %v823 = vadd.f32 %v807, 1.0
        %v824 = vadd.f32 %v808, 1.0
        %v825 = vadd.f32 %v809, 1.0
        %v826 = vadd.f32 %v810, 1.0
        %v827 = vadd.f32 %v811, 1.0
        %v828 = vadd.f32 %v812, 1.0
        %v829 = vadd.f32 %v813, 1.0
        %v830 = vadd.f32 %v814, 1.0
        %v831 = vadd.f32 %v815, 1.0
        %v832 = vadd.f32 %v816, 1.0
        %v833 = vadd.f32 %v817, 1.0
        %v834 = vadd.f32 %v818, 1.0
        %v835 = vadd.f32 %v787, 1.0
        %v836 = vadd.f32 %v788, 1.0
        %v837 = vadd.f32 %v789, 1.0
        %v838 = vadd.f32 %v790, 1.0
        %v839 = vadd.f32 %v791, 1.0
        %v840 = vadd.f32 %v792, 1.0
        %v841 = vadd.f32 %v793, 1.0
        %v842 = vadd.f32 %v794, 1.0
        %v843 = vadd.f32 %v795, 1.0
        %v844 = vadd.f32 %v796, 1.0
        %v845 = vadd.f32 %v797, 1.0
        %v846 = vadd.f32 %v798, 1.0
        %v847 = vadd.f32 %v799, 1.0
        %v848 = vadd.f32 %v800, 1.0
        %v849 = vadd.f32 %v801, 1.0
        %v850 = vadd.f32 %v802, 1.0
        %v851 = vmax.f32 %v835, 0.0
        %v852 = vmax.f32 %v836, 0.0
        %v853 = vmax.f32 %v837, 0.0
        %v854 = vmax.f32 %v838, 0.0
        %v855 = vmax.f32 %v839, 0.0
        %v856 = vmax.f32 %v840, 0.0
        %v857 = vmax.f32 %v841, 0.0
        %v858 = vmax.f32 %v842, 0.0
        %v859 = vmax.f32 %v843, 0.0
        %v860 = vmax.f32 %v844, 0.0
        %v861 = vmax.f32 %v845, 0.0
        %v862 = vmax.f32 %v846, 0.0
        %v863 = vmax.f32 %v847, 0.0
        %v864 = vmax.f32 %v848, 0.0
        %v865 = vmax.f32 %v849, 0.0
        %v866 = vmax.f32 %v850, 0.0
        %v867 = vmul.f32 %v851, %v851
        %v868 = vmul.f32 %v852, %v852
        %v869 = vmul.f32 %v853, %v853
        %v870 = vmul.f32 %v854, %v854
        %v871 = vmul.f32 %v855, %v855
        %v872 = vmul.f32 %v856, %v856
        %v873 = vmul.f32 %v857, %v857
        %v874 = vmul.f32 %v858, %v858
        %v875 = vmul.f32 %v859, %v859
        %v876 = vmul.f32 %v860, %v860
        %v877 = vmul.f32 %v861, %v861
        %v878 = vmul.f32 %v862, %v862
        %v879 = vmul.f32 %v863, %v863
        %v880 = vmul.f32 %v864, %v864
        %v881 = vmul.f32 %v865, %v865
        %v882 = vmul.f32 %v866, %v866
        %v883 = vsel %vm739, %v819, %v867
        %v884 = vsel %vm740, %v820, %v868
        %v885 = vsel %vm741, %v821, %v869
        %v886 = vsel %vm742, %v822, %v870
        %v887 = vsel %vm743, %v823, %v871
        %v888 = vsel %vm744, %v824, %v872
        %v889 = vsel %vm745, %v825, %v873
        %v890 = vsel %vm746, %v826, %v874
        %v891 = vsel %vm747, %v827, %v875
        %v892 = vsel %vm748, %v828, %v876
        %v893 = vsel %vm749, %v829, %v877
        %v894 = vsel %vm750, %v830, %v878
        %v895 = vsel %vm751, %v831, %v879
        %v896 = vsel %vm752, %v832, %v880
        %v897 = vsel %vm753, %v833, %v881
        %v898 = vsel %vm754, %v834, %v882
        %v899 = vmul.f32 %v659, %v771
        %v900 = vmul.f32 %v660, %v772
        %v901 = vmul.f32 %v661, %v773
        %v902 = vmul.f32 %v662, %v774
        %v903 = vmul.f32 %v663, %v775
        %v904 = vmul.f32 %v664, %v776
        %v905 = vmul.f32 %v665, %v777
        %v906 = vmul.f32 %v666, %v778
        %v907 = vmul.f32 %v667, %v779
        %v908 = vmul.f32 %v668, %v780
        %v909 = vmul.f32 %v669, %v781
        %v910 = vmul.f32 %v670, %v782
        %v911 = vmul.f32 %v671, %v783
        %v912 = vmul.f32 %v672, %v784
        %v913 = vmul.f32 %v673, %v785
        %v914 = vmul.f32 %v674, %v786
        %v915 = vmul.f32 %v899, %v322
        %v916 = vmul.f32 %v900, %v322
        %v917 = vmul.f32 %v901, %v322
        %v918 = vmul.f32 %v902, %v322
        %v919 = vmul.f32 %v903, %v322
        %v920 = vmul.f32 %v904, %v322
        %v921 = vmul.f32 %v905, %v322
        %v922 = vmul.f32 %v906, %v322
        %v923 = vmul.f32 %v907, %v322
        %v924 = vmul.f32 %v908, %v322
        %v925 = vmul.f32 %v909, %v322
        %v926 = vmul.f32 %v910, %v322
        %v927 = vmul.f32 %v911, %v322
        %v928 = vmul.f32 %v912, %v322
        %v929 = vmul.f32 %v913, %v322
        %v930 = vmul.f32 %v914, %v322
        %v931 = vsub.f32 1.0, %v659
        %v932 = vsub.f32 1.0, %v660
        %v933 = vsub.f32 1.0, %v661
        %v934 = vsub.f32 1.0, %v662
        %v935 = vsub.f32 1.0, %v663
        %v936 = vsub.f32 1.0, %v664
        %v937 = vsub.f32 1.0, %v665
        %v938 = vsub.f32 1.0, %v666
        %v939 = vsub.f32 1.0, %v667
        %v940 = vsub.f32 1.0, %v668
        %v941 = vsub.f32 1.0, %v669
        %v942 = vsub.f32 1.0, %v670
        %v943 = vsub.f32 1.0, %v671
        %v944 = vsub.f32 1.0, %v672
        %v945 = vsub.f32 1.0, %v673
        %v946 = vsub.f32 1.0, %v674
        %v947 = vmul.f32 %v723, %v883
        %v948 = vmul.f32 %v724, %v884
        %v949 = vmul.f32 %v725, %v885
        %v950 = vmul.f32 %v726, %v886
        %v951 = vmul.f32 %v727, %v887
        %v952 = vmul.f32 %v728, %v888
        %v953 = vmul.f32 %v729, %v889
        %v954 = vmul.f32 %v730, %v890
        %v955 = vmul.f32 %v731, %v891
        %v956 = vmul.f32 %v732, %v892
        %v957 = vmul.f32 %v733, %v893
        %v958 = vmul.f32 %v734, %v894
        %v959 = vmul.f32 %v735, %v895
        %v960 = vmul.f32 %v736, %v896
        %v961 = vmul.f32 %v737, %v897
        %v962 = vmul.f32 %v738, %v898
        %v963 = vmul.f32 %v931, %v947
        %v964 = vmul.f32 %v932, %v948
        %v965 = vmul.f32 %v933, %v949
        %v966 = vmul.f32 %v934, %v950
        %v967 = vmul.f32 %v935, %v951
        %v968 = vmul.f32 %v936, %v952
        %v969 = vmul.f32 %v937, %v953
        %v970 = vmul.f32 %v938, %v954
        %v971 = vmul.f32 %v939, %v955
        %v972 = vmul.f32 %v940, %v956
        %v973 = vmul.f32 %v941, %v957
        %v974 = vmul.f32 %v942, %v958
        %v975 = vmul.f32 %v943, %v959
        %v976 = vmul.f32 %v944, %v960
        %v977 = vmul.f32 %v945, %v961
        %v978 = vmul.f32 %v946, %v962
        %v979 = vmul.f32 %v963, %v322
        %v980 = vmul.f32 %v964, %v322
        %v981 = vmul.f32 %v965, %v322
        %v982 = vmul.f32 %v966, %v322
        %v983 = vmul.f32 %v967, %v322
        %v984 = vmul.f32 %v968, %v322
        %v985 = vmul.f32 %v969, %v322
        %v986 = vmul.f32 %v970, %v322
        %v987 = vmul.f32 %v971, %v322
        %v988 = vmul.f32 %v972, %v322
        %v989 = vmul.f32 %v973, %v322
        %v990 = vmul.f32 %v974, %v322
        %v991 = vmul.f32 %v975, %v322
        %v992 = vmul.f32 %v976, %v322
        %v993 = vmul.f32 %v977, %v322
        %v994 = vmul.f32 %v978, %v322
        %vm995 = vcmask 64512
        %v996 = vsel %vm995, %v915, 0.0
        %997 = vadd.xlane.f32.xlu0 %v996
        %v998 = vpop.xlane.xlu0 %997
        %v999 = vsel %vm995, %v916, 0.0
        %1000 = vadd.xlane.f32.xlu0 %v999
        %v1001 = vpop.xlane.xlu0 %1000
        %v1002 = vsel %vm995, %v917, 0.0
        %1003 = vadd.xlane.f32.xlu0 %v1002
        %v1004 = vpop.xlane.xlu0 %1003
        %v1005 = vsel %vm995, %v918, 0.0
        %1006 = vadd.xlane.f32.xlu0 %v1005
        %v1007 = vpop.xlane.xlu0 %1006
        %v1008 = vsel %vm995, %v919, 0.0
        %1009 = vadd.xlane.f32.xlu0 %v1008
        %v1010 = vpop.xlane.xlu0 %1009
        %v1011 = vsel %vm995, %v920, 0.0
        %1012 = vadd.xlane.f32.xlu0 %v1011
        %v1013 = vpop.xlane.xlu0 %1012
        %v1014 = vsel %vm995, %v921, 0.0
        %1015 = vadd.xlane.f32.xlu0 %v1014
        %v1016 = vpop.xlane.xlu0 %1015
        %v1017 = vsel %vm995, %v922, 0.0
        %1018 = vadd.xlane.f32.xlu0 %v1017
        %v1019 = vpop.xlane.xlu0 %1018
        %v1020 = vsel %vm995, %v923, 0.0
        %1021 = vadd.xlane.f32.xlu0 %v1020
        %v1022 = vpop.xlane.xlu0 %1021
        %v1023 = vsel %vm995, %v924, 0.0
        %1024 = vadd.xlane.f32.xlu0 %v1023
        %v1025 = vpop.xlane.xlu0 %1024
        %v1026 = vsel %vm995, %v925, 0.0
        %1027 = vadd.xlane.f32.xlu0 %v1026
        %v1028 = vpop.xlane.xlu0 %1027
        %v1029 = vsel %vm995, %v926, 0.0
        %1030 = vadd.xlane.f32.xlu0 %v1029
        %v1031 = vpop.xlane.xlu0 %1030
        %v1032 = vsel %vm995, %v927, 0.0
        %1033 = vadd.xlane.f32.xlu0 %v1032
        %v1034 = vpop.xlane.xlu0 %1033
        %v1035 = vsel %vm995, %v928, 0.0
        %1036 = vadd.xlane.f32.xlu0 %v1035
        %v1037 = vpop.xlane.xlu0 %1036
        %v1038 = vsel %vm995, %v929, 0.0
        %1039 = vadd.xlane.f32.xlu0 %v1038
        %v1040 = vpop.xlane.xlu0 %1039
        %v1041 = vsel %vm995, %v930, 0.0
        %1042 = vadd.xlane.f32.xlu0 %v1041
        %v1043 = vpop.xlane.xlu0 %1042
        %v1044 = vadd.f32 %v998, 1.0
        %v1045 = vadd.f32 %v1001, 1.0
        %v1046 = vadd.f32 %v1004, 1.0
        %v1047 = vadd.f32 %v1007, 1.0
        %v1048 = vadd.f32 %v1010, 1.0
        %v1049 = vadd.f32 %v1013, 1.0
        %v1050 = vadd.f32 %v1016, 1.0
        %v1051 = vadd.f32 %v1019, 1.0
        %v1052 = vadd.f32 %v1022, 1.0
        %v1053 = vadd.f32 %v1025, 1.0
        %v1054 = vadd.f32 %v1028, 1.0
        %v1055 = vadd.f32 %v1031, 1.0
        %v1056 = vadd.f32 %v1034, 1.0
        %v1057 = vadd.f32 %v1037, 1.0
        %v1058 = vadd.f32 %v1040, 1.0
        %v1059 = vadd.f32 %v1043, 1.0
        %v1060 = vsel %vm995, %v979, 0.0
        %1061 = vadd.xlane.f32.xlu0 %v1060
        %v1062 = vpop.xlane.xlu0 %1061
        %v1063 = vsel %vm995, %v980, 0.0
        %1064 = vadd.xlane.f32.xlu0 %v1063
        %v1065 = vpop.xlane.xlu0 %1064
        %v1066 = vsel %vm995, %v981, 0.0
        %1067 = vadd.xlane.f32.xlu0 %v1066
        %v1068 = vpop.xlane.xlu0 %1067
        %v1069 = vsel %vm995, %v982, 0.0
        %1070 = vadd.xlane.f32.xlu0 %v1069
        %v1071 = vpop.xlane.xlu0 %1070
        %v1072 = vsel %vm995, %v983, 0.0
        %1073 = vadd.xlane.f32.xlu0 %v1072
        %v1074 = vpop.xlane.xlu0 %1073
        %v1075 = vsel %vm995, %v984, 0.0
        %1076 = vadd.xlane.f32.xlu0 %v1075
        %v1077 = vpop.xlane.xlu0 %1076
        %v1078 = vsel %vm995, %v985, 0.0
        %1079 = vadd.xlane.f32.xlu0 %v1078
        %v1080 = vpop.xlane.xlu0 %1079
        %v1081 = vsel %vm995, %v986, 0.0
        %1082 = vadd.xlane.f32.xlu0 %v1081
        %v1083 = vpop.xlane.xlu0 %1082
        %v1084 = vsel %vm995, %v987, 0.0
        %1085 = vadd.xlane.f32.xlu0 %v1084
        %v1086 = vpop.xlane.xlu0 %1085
        %v1087 = vsel %vm995, %v988, 0.0
        %1088 = vadd.xlane.f32.xlu0 %v1087
        %v1089 = vpop.xlane.xlu0 %1088
        %v1090 = vsel %vm995, %v989, 0.0
        %1091 = vadd.xlane.f32.xlu0 %v1090
        %v1092 = vpop.xlane.xlu0 %1091
        %v1093 = vsel %vm995, %v990, 0.0
        %1094 = vadd.xlane.f32.xlu0 %v1093
        %v1095 = vpop.xlane.xlu0 %1094
        %v1096 = vsel %vm995, %v991, 0.0
        %1097 = vadd.xlane.f32.xlu0 %v1096
        %v1098 = vpop.xlane.xlu0 %1097
        %v1099 = vsel %vm995, %v992, 0.0
        %1100 = vadd.xlane.f32.xlu0 %v1099
        %v1101 = vpop.xlane.xlu0 %1100
        %v1102 = vsel %vm995, %v993, 0.0
        %1103 = vadd.xlane.f32.xlu0 %v1102
        %v1104 = vpop.xlane.xlu0 %1103
        %v1105 = vsel %vm995, %v994, 0.0
        %1106 = vadd.xlane.f32.xlu0 %v1105
        %v1107 = vpop.xlane.xlu0 %1106
        %v1108 = vadd.f32 %v1044, %v1062
        %v1109 = vadd.f32 %v1045, %v1065
        %v1110 = vadd.f32 %v1046, %v1068
        %v1111 = vadd.f32 %v1047, %v1071
        %v1112 = vadd.f32 %v1048, %v1074
        %v1113 = vadd.f32 %v1049, %v1077
        %v1114 = vadd.f32 %v1050, %v1080
        %v1115 = vadd.f32 %v1051, %v1083
        %v1116 = vadd.f32 %v1052, %v1086
        %v1117 = vadd.f32 %v1053, %v1089
        %v1118 = vadd.f32 %v1054, %v1092
        %v1119 = vadd.f32 %v1055, %v1095
        %v1120 = vadd.f32 %v1056, %v1098
        %v1121 = vadd.f32 %v1057, %v1101
        %v1122 = vadd.f32 %v1058, %v1104
        %v1123 = vadd.f32 %v1059, %v1107
        %v1124 = vrcp.pop %v1108
        %v1125 = vmul.f32 %v1108, %v1124
        %v1126 = vsub.f32 1.0, %v1125
        %v1127 = vmul.f32 %v1124, %v1126
        %v1128 = vadd.f32 %v1124, %v1127
        %vm1129 = vweird.f32 %v1108
        %vm1130 = vweird.f32 %v1124
        %vm1131 = vmor %vm1129, %vm1130
        %v1132 = vsel %vm1131, %v1124, %v1128
        %v1133 = vand.u32 2147483647, %v1108
        %vm1134 = vcmp.eq.f32.partialorder %v1133, 8.507059e+37
        %v1135 = vand.u32 %v1108, 2147483648
        %v1136 = vor.u32 1.1754944e-38, %v1135
        %v1137 = vsel %vm1134, %v1136, %v1132
        %v1138 = vmul.f32 %v1044, %v1137
        %v1139 = vrcp.pop %v1109
        %v1140 = vmul.f32 %v1109, %v1139
        %v1141 = vsub.f32 1.0, %v1140
        %v1142 = vmul.f32 %v1139, %v1141
        %v1143 = vadd.f32 %v1139, %v1142
        %vm1144 = vweird.f32 %v1109
        %vm1145 = vweird.f32 %v1139
        %vm1146 = vmor %vm1144, %vm1145
        %v1147 = vsel %vm1146, %v1139, %v1143
        %v1148 = vand.u32 2147483647, %v1109
        %vm1149 = vcmp.eq.f32.partialorder %v1148, 8.507059e+37
        %v1150 = vand.u32 %v1109, 2147483648
        %v1151 = vor.u32 1.1754944e-38, %v1150
        %v1152 = vsel %vm1149, %v1151, %v1147
        %v1153 = vmul.f32 %v1045, %v1152
        %v1154 = vrcp.pop %v1110
        %v1155 = vmul.f32 %v1110, %v1154
        %v1156 = vsub.f32 1.0, %v1155
        %v1157 = vmul.f32 %v1154, %v1156
        %v1158 = vadd.f32 %v1154, %v1157
        %vm1159 = vweird.f32 %v1110
        %vm1160 = vweird.f32 %v1154
        %vm1161 = vmor %vm1159, %vm1160
        %v1162 = vsel %vm1161, %v1154, %v1158
        %v1163 = vand.u32 2147483647, %v1110
        %vm1164 = vcmp.eq.f32.partialorder %v1163, 8.507059e+37
        %v1165 = vand.u32 %v1110, 2147483648
        %v1166 = vor.u32 1.1754944e-38, %v1165
        %v1167 = vsel %vm1164, %v1166, %v1162
        %v1168 = vmul.f32 %v1046, %v1167
        %v1169 = vrcp.pop %v1111
        %v1170 = vmul.f32 %v1111, %v1169
        %v1171 = vsub.f32 1.0, %v1170
        %v1172 = vmul.f32 %v1169, %v1171
        %v1173 = vadd.f32 %v1169, %v1172
        %vm1174 = vweird.f32 %v1111
        %vm1175 = vweird.f32 %v1169
        %vm1176 = vmor %vm1174, %vm1175
        %v1177 = vsel %vm1176, %v1169, %v1173
        %v1178 = vand.u32 2147483647, %v1111
        %vm1179 = vcmp.eq.f32.partialorder %v1178, 8.507059e+37
        %v1180 = vand.u32 %v1111, 2147483648
        %v1181 = vor.u32 1.1754944e-38, %v1180
        %v1182 = vsel %vm1179, %v1181, %v1177
        %v1183 = vmul.f32 %v1047, %v1182
        %v1184 = vrcp.pop %v1112
        %v1185 = vmul.f32 %v1112, %v1184
        %v1186 = vsub.f32 1.0, %v1185
        %v1187 = vmul.f32 %v1184, %v1186
        %v1188 = vadd.f32 %v1184, %v1187
        %vm1189 = vweird.f32 %v1112
        %vm1190 = vweird.f32 %v1184
        %vm1191 = vmor %vm1189, %vm1190
        %v1192 = vsel %vm1191, %v1184, %v1188
        %v1193 = vand.u32 2147483647, %v1112
        %vm1194 = vcmp.eq.f32.partialorder %v1193, 8.507059e+37
        %v1195 = vand.u32 %v1112, 2147483648
        %v1196 = vor.u32 1.1754944e-38, %v1195
        %v1197 = vsel %vm1194, %v1196, %v1192
        %v1198 = vmul.f32 %v1048, %v1197
        %v1199 = vrcp.pop %v1113
        %v1200 = vmul.f32 %v1113, %v1199
        %v1201 = vsub.f32 1.0, %v1200
        %v1202 = vmul.f32 %v1199, %v1201
        %v1203 = vadd.f32 %v1199, %v1202
        %vm1204 = vweird.f32 %v1113
        %vm1205 = vweird.f32 %v1199
        %vm1206 = vmor %vm1204, %vm1205
        %v1207 = vsel %vm1206, %v1199, %v1203
        %v1208 = vand.u32 2147483647, %v1113
        %vm1209 = vcmp.eq.f32.partialorder %v1208, 8.507059e+37
        %v1210 = vand.u32 %v1113, 2147483648
        %v1211 = vor.u32 1.1754944e-38, %v1210
        %v1212 = vsel %vm1209, %v1211, %v1207
        %v1213 = vmul.f32 %v1049, %v1212
        %v1214 = vrcp.pop %v1114
        %v1215 = vmul.f32 %v1114, %v1214
        %v1216 = vsub.f32 1.0, %v1215
        %v1217 = vmul.f32 %v1214, %v1216
        %v1218 = vadd.f32 %v1214, %v1217
        %vm1219 = vweird.f32 %v1114
        %vm1220 = vweird.f32 %v1214
        %vm1221 = vmor %vm1219, %vm1220
        %v1222 = vsel %vm1221, %v1214, %v1218
        %v1223 = vand.u32 2147483647, %v1114
        %vm1224 = vcmp.eq.f32.partialorder %v1223, 8.507059e+37
        %v1225 = vand.u32 %v1114, 2147483648
        %v1226 = vor.u32 1.1754944e-38, %v1225
        %v1227 = vsel %vm1224, %v1226, %v1222
        %v1228 = vmul.f32 %v1050, %v1227
        %v1229 = vrcp.pop %v1115
        %v1230 = vmul.f32 %v1115, %v1229
        %v1231 = vsub.f32 1.0, %v1230
        %v1232 = vmul.f32 %v1229, %v1231
        %v1233 = vadd.f32 %v1229, %v1232
        %vm1234 = vweird.f32 %v1115
        %vm1235 = vweird.f32 %v1229
        %vm1236 = vmor %vm1234, %vm1235
        %v1237 = vsel %vm1236, %v1229, %v1233
        %v1238 = vand.u32 2147483647, %v1115
        %vm1239 = vcmp.eq.f32.partialorder %v1238, 8.507059e+37
        %v1240 = vand.u32 %v1115, 2147483648
        %v1241 = vor.u32 1.1754944e-38, %v1240
        %v1242 = vsel %vm1239, %v1241, %v1237
        %v1243 = vmul.f32 %v1051, %v1242
        %v1244 = vrcp.pop %v1116
        %v1245 = vmul.f32 %v1116, %v1244
        %v1246 = vsub.f32 1.0, %v1245
        %v1247 = vmul.f32 %v1244, %v1246
        %v1248 = vadd.f32 %v1244, %v1247
        %vm1249 = vweird.f32 %v1116
        %vm1250 = vweird.f32 %v1244
        %vm1251 = vmor %vm1249, %vm1250
        %v1252 = vsel %vm1251, %v1244, %v1248
        %v1253 = vand.u32 2147483647, %v1116
        %vm1254 = vcmp.eq.f32.partialorder %v1253, 8.507059e+37
        %v1255 = vand.u32 %v1116, 2147483648
        %v1256 = vor.u32 1.1754944e-38, %v1255
        %v1257 = vsel %vm1254, %v1256, %v1252
        %v1258 = vmul.f32 %v1052, %v1257
        %v1259 = vrcp.pop %v1117
        %v1260 = vmul.f32 %v1117, %v1259
        %v1261 = vsub.f32 1.0, %v1260
        %v1262 = vmul.f32 %v1259, %v1261
        %v1263 = vadd.f32 %v1259, %v1262
        %vm1264 = vweird.f32 %v1117
        %vm1265 = vweird.f32 %v1259
        %vm1266 = vmor %vm1264, %vm1265
        %v1267 = vsel %vm1266, %v1259, %v1263
        %v1268 = vand.u32 2147483647, %v1117
        %vm1269 = vcmp.eq.f32.partialorder %v1268, 8.507059e+37
        %v1270 = vand.u32 %v1117, 2147483648
        %v1271 = vor.u32 1.1754944e-38, %v1270
        %v1272 = vsel %vm1269, %v1271, %v1267
        %v1273 = vmul.f32 %v1053, %v1272
        %v1274 = vrcp.pop %v1118
        %v1275 = vmul.f32 %v1118, %v1274
        %v1276 = vsub.f32 1.0, %v1275
        %v1277 = vmul.f32 %v1274, %v1276
        %v1278 = vadd.f32 %v1274, %v1277
        %vm1279 = vweird.f32 %v1118
        %vm1280 = vweird.f32 %v1274
        %vm1281 = vmor %vm1279, %vm1280
        %v1282 = vsel %vm1281, %v1274, %v1278
        %v1283 = vand.u32 2147483647, %v1118
        %vm1284 = vcmp.eq.f32.partialorder %v1283, 8.507059e+37
        %v1285 = vand.u32 %v1118, 2147483648
        %v1286 = vor.u32 1.1754944e-38, %v1285
        %v1287 = vsel %vm1284, %v1286, %v1282
        %v1288 = vmul.f32 %v1054, %v1287
        %v1289 = vrcp.pop %v1119
        %v1290 = vmul.f32 %v1119, %v1289
        %v1291 = vsub.f32 1.0, %v1290
        %v1292 = vmul.f32 %v1289, %v1291
        %v1293 = vadd.f32 %v1289, %v1292
        %vm1294 = vweird.f32 %v1119
        %vm1295 = vweird.f32 %v1289
        %vm1296 = vmor %vm1294, %vm1295
        %v1297 = vsel %vm1296, %v1289, %v1293
        %v1298 = vand.u32 2147483647, %v1119
        %vm1299 = vcmp.eq.f32.partialorder %v1298, 8.507059e+37
        %v1300 = vand.u32 %v1119, 2147483648
        %v1301 = vor.u32 1.1754944e-38, %v1300
        %v1302 = vsel %vm1299, %v1301, %v1297
        %v1303 = vmul.f32 %v1055, %v1302
        %v1304 = vrcp.pop %v1120
        %v1305 = vmul.f32 %v1120, %v1304
        %v1306 = vsub.f32 1.0, %v1305
        %v1307 = vmul.f32 %v1304, %v1306
        %v1308 = vadd.f32 %v1304, %v1307
        %vm1309 = vweird.f32 %v1120
        %vm1310 = vweird.f32 %v1304
        %vm1311 = vmor %vm1309, %vm1310
        %v1312 = vsel %vm1311, %v1304, %v1308
        %v1313 = vand.u32 2147483647, %v1120
        %vm1314 = vcmp.eq.f32.partialorder %v1313, 8.507059e+37
        %v1315 = vand.u32 %v1120, 2147483648
        %v1316 = vor.u32 1.1754944e-38, %v1315
        %v1317 = vsel %vm1314, %v1316, %v1312
        %v1318 = vmul.f32 %v1056, %v1317
        %v1319 = vrcp.pop %v1121
        %v1320 = vmul.f32 %v1121, %v1319
        %v1321 = vsub.f32 1.0, %v1320
        %v1322 = vmul.f32 %v1319, %v1321
        %v1323 = vadd.f32 %v1319, %v1322
        %vm1324 = vweird.f32 %v1121
        %vm1325 = vweird.f32 %v1319
        %vm1326 = vmor %vm1324, %vm1325
        %v1327 = vsel %vm1326, %v1319, %v1323
        %v1328 = vand.u32 2147483647, %v1121
        %vm1329 = vcmp.eq.f32.partialorder %v1328, 8.507059e+37
        %v1330 = vand.u32 %v1121, 2147483648
        %v1331 = vor.u32 1.1754944e-38, %v1330
        %v1332 = vsel %vm1329, %v1331, %v1327
        %v1333 = vmul.f32 %v1057, %v1332
        %v1334 = vrcp.pop %v1122
        %v1335 = vmul.f32 %v1122, %v1334
        %v1336 = vsub.f32 1.0, %v1335
        %v1337 = vmul.f32 %v1334, %v1336
        %v1338 = vadd.f32 %v1334, %v1337
        %vm1339 = vweird.f32 %v1122
        %vm1340 = vweird.f32 %v1334
        %vm1341 = vmor %vm1339, %vm1340
        %v1342 = vsel %vm1341, %v1334, %v1338
        %v1343 = vand.u32 2147483647, %v1122
        %vm1344 = vcmp.eq.f32.partialorder %v1343, 8.507059e+37
        %v1345 = vand.u32 %v1122, 2147483648
        %v1346 = vor.u32 1.1754944e-38, %v1345
        %v1347 = vsel %vm1344, %v1346, %v1342
        %v1348 = vmul.f32 %v1058, %v1347
        %v1349 = vrcp.pop %v1123
        %v1350 = vmul.f32 %v1123, %v1349
        %v1351 = vsub.f32 1.0, %v1350
        %v1352 = vmul.f32 %v1349, %v1351
        %v1353 = vadd.f32 %v1349, %v1352
        %vm1354 = vweird.f32 %v1123
        %vm1355 = vweird.f32 %v1349
        %vm1356 = vmor %vm1354, %vm1355
        %v1357 = vsel %vm1356, %v1349, %v1353
        %v1358 = vand.u32 2147483647, %v1123
        %vm1359 = vcmp.eq.f32.partialorder %v1358, 8.507059e+37
        %v1360 = vand.u32 %v1123, 2147483648
        %v1361 = vor.u32 1.1754944e-38, %v1360
        %v1362 = vsel %vm1359, %v1361, %v1357
        %v1363 = vmul.f32 %v1059, %v1362
        %v1364 = vlaneseq
        %v1365 = vshrl.u32 %v1364, 7
        %1367 = vset.pattern.permute.xlu0 %v1365
        %1368 = vperm.xlu0 %1367, %v627
        %v1369 = vpop.permute.xlu0 %1368
        %v1370 = vperm.slane %v318, 1
        %v1371 = vlaneseq
        %v1372 = vshrl.u32 %v1371, 7
        %1374 = vset.pattern.permute.xlu0 %v1372
        %1375 = vperm.xlu0 %1374, %v1370
        %v1376 = vpop.permute.xlu0 %1375
        %v1377 = vperm.slane %v318, 2
        %v1378 = vlaneseq
        %v1379 = vshrl.u32 %v1378, 7
        %1381 = vset.pattern.permute.xlu0 %v1379
        %1382 = vperm.xlu0 %1381, %v1377
        %v1383 = vpop.permute.xlu0 %1382
        %v1384 = vperm.slane %v318, 3
        %v1385 = vlaneseq
        %v1386 = vshrl.u32 %v1385, 7
        %1388 = vset.pattern.permute.xlu0 %v1386
        %1389 = vperm.xlu0 %1388, %v1384
        %v1390 = vpop.permute.xlu0 %1389
        %v1391 = vperm.slane %v318, 4
        %v1392 = vlaneseq
        %v1393 = vshrl.u32 %v1392, 7
        %1395 = vset.pattern.permute.xlu0 %v1393
        %1396 = vperm.xlu0 %1395, %v1391
        %v1397 = vpop.permute.xlu0 %1396
        %v1398 = vperm.slane %v318, 5
        %v1399 = vlaneseq
        %v1400 = vshrl.u32 %v1399, 7
        %1402 = vset.pattern.permute.xlu0 %v1400
        %1403 = vperm.xlu0 %1402, %v1398
        %v1404 = vpop.permute.xlu0 %1403
        %v1405 = vperm.slane %v318, 6
        %v1406 = vlaneseq
        %v1407 = vshrl.u32 %v1406, 7
        %1409 = vset.pattern.permute.xlu0 %v1407
        %1410 = vperm.xlu0 %1409, %v1405
        %v1411 = vpop.permute.xlu0 %1410
        %v1412 = vperm.slane %v318, 7
        %v1413 = vlaneseq
        %v1414 = vshrl.u32 %v1413, 7
        %1416 = vset.pattern.permute.xlu0 %v1414
        %1417 = vperm.xlu0 %1416, %v1412
        %v1418 = vpop.permute.xlu0 %1417
        %v1419 = vlaneseq
        %v1420 = vshrl.u32 %v1419, 7
        %1422 = vset.pattern.permute.xlu0 %v1420
        %1423 = vperm.xlu0 %1422, %v635
        %v1424 = vpop.permute.xlu0 %1423
        %v1425 = vperm.slane %v319, 1
        %v1426 = vlaneseq
        %v1427 = vshrl.u32 %v1426, 7
        %1429 = vset.pattern.permute.xlu0 %v1427
        %1430 = vperm.xlu0 %1429, %v1425
        %v1431 = vpop.permute.xlu0 %1430
        %v1432 = vperm.slane %v319, 2
        %v1433 = vlaneseq
        %v1434 = vshrl.u32 %v1433, 7
        %1436 = vset.pattern.permute.xlu0 %v1434
        %1437 = vperm.xlu0 %1436, %v1432
        %v1438 = vpop.permute.xlu0 %1437
        %v1439 = vperm.slane %v319, 3
        %v1440 = vlaneseq
        %v1441 = vshrl.u32 %v1440, 7
        %1443 = vset.pattern.permute.xlu0 %v1441
        %1444 = vperm.xlu0 %1443, %v1439
        %v1445 = vpop.permute.xlu0 %1444
        %v1446 = vperm.slane %v319, 4
        %v1447 = vlaneseq
        %v1448 = vshrl.u32 %v1447, 7
        %1450 = vset.pattern.permute.xlu0 %v1448
        %1451 = vperm.xlu0 %1450, %v1446
        %v1452 = vpop.permute.xlu0 %1451
        %v1453 = vperm.slane %v319, 5
        %v1454 = vlaneseq
        %v1455 = vshrl.u32 %v1454, 7
        %1457 = vset.pattern.permute.xlu0 %v1455
        %1458 = vperm.xlu0 %1457, %v1453
        %v1459 = vpop.permute.xlu0 %1458
        %v1460 = vperm.slane %v319, 6
        %v1461 = vlaneseq
        %v1462 = vshrl.u32 %v1461, 7
        %1464 = vset.pattern.permute.xlu0 %v1462
        %1465 = vperm.xlu0 %1464, %v1460
        %v1466 = vpop.permute.xlu0 %1465
        %v1467 = vperm.slane %v319, 7
        %v1468 = vlaneseq
        %v1469 = vshrl.u32 %v1468, 7
        %1471 = vset.pattern.permute.xlu0 %v1469
        %1472 = vperm.xlu0 %1471, %v1467
        %v1473 = vpop.permute.xlu0 %1472
        %v1490 = vmul.f32 %v1138, %v1369
        %v1491 = vmul.f32 %v1153, %v1376
        %v1492 = vmul.f32 %v1168, %v1383
        %v1493 = vmul.f32 %v1183, %v1390
        %v1494 = vmul.f32 %v1198, %v1397
        %v1495 = vmul.f32 %v1213, %v1404
        %v1496 = vmul.f32 %v1228, %v1411
        %v1497 = vmul.f32 %v1243, %v1418
        %v1498 = vmul.f32 %v1258, %v1424
        %v1499 = vmul.f32 %v1273, %v1431
        %v1500 = vmul.f32 %v1288, %v1438
        %v1501 = vmul.f32 %v1303, %v1445
        %v1502 = vmul.f32 %v1318, %v1452
        %v1503 = vmul.f32 %v1333, %v1459
        %v1504 = vmul.f32 %v1348, %v1466
        %v1505 = vmul.f32 %v1363, %v1473
        %1522 = vset.pattern.permute.xlu0 0
        %1523 = vperm.xlu0 %1522, %v1490
        %v1524 = vpop.permute.xlu0 %1523
        %1525 = vset.pattern.permute.xlu0 0
        %1526 = vperm.xlu0 %1525, %v1491
        %v1527 = vpop.permute.xlu0 %1526
        %1528 = vset.pattern.permute.xlu0 0
        %1529 = vperm.xlu0 %1528, %v1492
        %v1530 = vpop.permute.xlu0 %1529
        %1531 = vset.pattern.permute.xlu0 0
        %1532 = vperm.xlu0 %1531, %v1493
        %v1533 = vpop.permute.xlu0 %1532
        %1534 = vset.pattern.permute.xlu0 0
        %1535 = vperm.xlu0 %1534, %v1494
        %v1536 = vpop.permute.xlu0 %1535
        %1537 = vset.pattern.permute.xlu0 0
        %1538 = vperm.xlu0 %1537, %v1495
        %v1539 = vpop.permute.xlu0 %1538
        %1540 = vset.pattern.permute.xlu0 0
        %1541 = vperm.xlu0 %1540, %v1496
        %v1542 = vpop.permute.xlu0 %1541
        %1543 = vset.pattern.permute.xlu0 0
        %1544 = vperm.xlu0 %1543, %v1497
        %v1545 = vpop.permute.xlu0 %1544
        %1546 = vset.pattern.permute.xlu0 0
        %1547 = vperm.xlu0 %1546, %v1498
        %v1548 = vpop.permute.xlu0 %1547
        %1549 = vset.pattern.permute.xlu0 0
        %1550 = vperm.xlu0 %1549, %v1499
        %v1551 = vpop.permute.xlu0 %1550
        %1552 = vset.pattern.permute.xlu0 0
        %1553 = vperm.xlu0 %1552, %v1500
        %v1554 = vpop.permute.xlu0 %1553
        %1555 = vset.pattern.permute.xlu0 0
        %1556 = vperm.xlu0 %1555, %v1501
        %v1557 = vpop.permute.xlu0 %1556
        %1558 = vset.pattern.permute.xlu0 0
        %1559 = vperm.xlu0 %1558, %v1502
        %v1560 = vpop.permute.xlu0 %1559
        %1561 = vset.pattern.permute.xlu0 0
        %1562 = vperm.xlu0 %1561, %v1503
        %v1563 = vpop.permute.xlu0 %1562
        %1564 = vset.pattern.permute.xlu0 0
        %1565 = vperm.xlu0 %1564, %v1504
        %v1566 = vpop.permute.xlu0 %1565
        %1567 = vset.pattern.permute.xlu0 0
        %1568 = vperm.xlu0 %1567, %v1505
        %v1569 = vpop.permute.xlu0 %1568
        %v1570 = vlaneseq
        %v1571 = vand.u32 %v1570, 127
        %v1572 = vperm.slane %v1524, %v1571
        %v1573 = vperm.slane %v1527, %v1571
        %v1574 = vperm.slane %v1530, %v1571
        %v1575 = vperm.slane %v1533, %v1571
        %v1576 = vperm.slane %v1536, %v1571
        %v1577 = vperm.slane %v1539, %v1571
        %v1578 = vperm.slane %v1542, %v1571
        %v1579 = vperm.slane %v1545, %v1571
        %v1580 = vperm.slane %v1548, %v1571
        %v1581 = vperm.slane %v1551, %v1571
        %v1582 = vperm.slane %v1554, %v1571
        %v1583 = vperm.slane %v1557, %v1571
        %v1584 = vperm.slane %v1560, %v1571
        %v1585 = vperm.slane %v1563, %v1571
        %v1586 = vperm.slane %v1566, %v1571
        %v1587 = vperm.slane %v1569, %v1571
        %vm1588 = vcmask 1041409
        %v1589 = vsel %vm1588, %v1573, %v1572
        %vm1590 = vcmask 1042434
        %v1591 = vsel %vm1590, %v1574, %v1589
        %vm1592 = vcmask 1043459
        %v1593 = vsel %vm1592, %v1575, %v1591
        %vm1594 = vcmask 1044484
        %v1595 = vsel %vm1594, %v1576, %v1593
        %vm1596 = vcmask 1045509
        %v1597 = vsel %vm1596, %v1577, %v1595
        %vm1598 = vcmask 1046534
        %v1599 = vsel %vm1598, %v1578, %v1597
        %vm1600 = vcmask 1047559
        %v1601 = vsel %vm1600, %v1579, %v1599
        %v1602 = vsel %vm1588, %v1581, %v1580
        %v1603 = vsel %vm1590, %v1582, %v1602
        %v1604 = vsel %vm1592, %v1583, %v1603
        %v1605 = vsel %vm1594, %v1584, %v1604
        %v1606 = vsel %vm1596, %v1585, %v1605
        %v1607 = vsel %vm1598, %v1586, %v1606
        %v1608 = vsel %vm1600, %v1587, %v1607
        %v1611 = vsel %vm995, %v1601, 0.0
        %1612 = vadd.xlane.f32.xlu0 %v1611
        %v1613 = vpop.xlane.xlu0 %1612
        %v1614 = vsel %vm995, %v1608, 0.0
        %1615 = vadd.xlane.f32.xlu0 %v1614
        %v1616 = vpop.xlane.xlu0 %1615
        %v1617 = vadd.f32 %v1613, 0.0
        %v1618 = vadd.f32 %v1616, 0.0
        %v1619 = vsel %vm995, %v318, 0.0
        %1620 = vadd.xlane.f32.xlu0 %v1619
        %v1621 = vpop.xlane.xlu0 %1620
        %v1622 = vsel %vm995, %v319, 0.0
        %1623 = vadd.xlane.f32.xlu0 %v1622
        %v1624 = vpop.xlane.xlu0 %1623
        %v1625 = vrcp.pop %v1621
        %v1626 = vmul.f32 %v1621, %v1625
        %v1627 = vsub.f32 1.0, %v1626
        %v1628 = vmul.f32 %v1625, %v1627
        %v1629 = vadd.f32 %v1625, %v1628
        %vm1630 = vweird.f32 %v1621
        %vm1631 = vweird.f32 %v1625
        %vm1632 = vmor %vm1630, %vm1631
        %v1633 = vsel %vm1632, %v1625, %v1629
        %v1634 = vand.u32 2147483647, %v1621
        %vm1635 = vcmp.eq.f32.partialorder %v1634, 8.507059e+37
        %v1636 = vand.u32 %v1621, 2147483648
        %v1637 = vor.u32 1.1754944e-38, %v1636
        %v1638 = vsel %vm1635, %v1637, %v1633
        %v1639 = vmul.f32 %v1617, %v1638
        %v1640 = vrcp.pop %v1624
        %v1641 = vmul.f32 %v1624, %v1640
        %v1642 = vsub.f32 1.0, %v1641
        %v1643 = vmul.f32 %v1640, %v1642
        %v1644 = vadd.f32 %v1640, %v1643
        %vm1645 = vweird.f32 %v1624
        %vm1646 = vweird.f32 %v1640
        %vm1647 = vmor %vm1645, %vm1646
        %v1648 = vsel %vm1647, %v1640, %v1644
        %v1649 = vand.u32 2147483647, %v1624
        %vm1650 = vcmp.eq.f32.partialorder %v1649, 8.507059e+37
        %v1651 = vand.u32 %v1624, 2147483648
        %v1652 = vor.u32 1.1754944e-38, %v1651
        %v1653 = vsel %vm1650, %v1652, %v1648
        %v1654 = vmul.f32 %v1618, %v1653
        %v1657 = vperm.slane %v1639, %v1571
        %v1658 = vperm.slane %v1654, %v1571
        %v1659 = vsel %vm1588, %v1658, %v1657
        %vm1661 = vcmask 58368
        %v1662 = vsel %vm1661, %v1659, 0.0
        %1663 = vadd.xlane.f32.xlu0 %v1662
        %v1664 = vpop.xlane.xlu0 %1663
        %v1665 = vrcp.pop 8.0
        %v1666 = vmul.f32 8.0, %v1665
        %v1667 = vsub.f32 1.0, %v1666
        %v1668 = vmul.f32 %v1665, %v1667
        %v1669 = vadd.f32 %v1665, %v1668
        %vm1670 = vweird.f32 %v1665
        %v1671 = vsel %vm1670, %v1665, %v1669
        %v1672 = vmul.f32 %v1664, %v1671
        %v1674 = vperm.slane %v1672, %v1571
        %vm1676 = vcmask 8192
        %1677 = vst.msk [vmem:[%s312] sm:$0x1] %vm1676, %v1674
        %s1678 = sand.u32 %s132, 1
        %s1679 = scalar_lea.sflag [#allocation4], %s1678
        %s1680 = sand.u32 %s132, 1
        %s1681 = scalar_lea.vmem [#allocation10], %s1680
        // Predicated region
        $region53: #{tpu_custom_call.1} parent=35 // pred_check
          %p1682 = pneg %p142
        $region54: #{tpu_custom_call.1} parent=35 // pred_check_branch
          %1684 = sbr.rel (%p1682) target = $region56
        $region55: #{tpu_custom_call.1} parent=35 // pred_region
          %1686 = vsyncadd %s1679, 0
          %s1687 = scalar_lea.hbm %s4, %s25
          %s1689 = sshll.u32 %s1681, 4
          %s1690 = int_to_ptr.vmem [resolvable:$true] %s1689
          %s1691 = sshll.u32 %s1687, 4
          %s1692 = int_to_ptr.hbm [resolvable:$true] %s1691
          %1694 = dma.vmem_to_hbm [thread:$0]  %s1690, 16, %s1692, %s1679
        $region56: #{tpu_custom_call.1} parent=35 // pred_fallthru
          _
      $region36: #{tpu_custom_call.1} parent=5 // pred_fallthru
        _
      %p1695 = scmp.le.s32.totalorder 2, %s20
      // Predicated region
      $region57: #{tpu_custom_call.1} parent=5 // pred_check
        %p1696 = pneg %p1695
      $region58: #{tpu_custom_call.1} parent=5 // pred_check_branch
        %1698 = sbr.rel (%p1696) target = $region60
      $region59: #{tpu_custom_call.1} parent=5 // pred_region
        %s1699 = ssub.s32 %s20, 2
        // Predicated region
        $region61: #{tpu_custom_call.1} parent=59 // pred_check
          %p1700 = pneg %p148
        $region62: #{tpu_custom_call.1} parent=59 // pred_check_branch
          %1702 = sbr.rel (%p1700) target = $region64
        $region63: #{tpu_custom_call.1} parent=59 // pred_region
          %s1703 = sand.u32 %s133, 1
          %s1704 = scalar_lea.sflag [#allocation4], %s1703
          %s1705 = sand.u32 %s133, 1
          %s1706 = scalar_lea.vmem [#allocation10], %s1705
          %1708 = dma.done %s1704, 16
        $region64: #{tpu_custom_call.1} parent=59 // pred_fallthru
          _
      $region60: #{tpu_custom_call.1} parent=5 // pred_fallthru
        _
    $region6: #{tpu_custom_call.1} parent=1 // loop_footer
      %s24 = sadd.s32 1, %s20
    $region7: #{tpu_custom_call.1} parent=1 // loop_footer_branch
      %19 = sbr.rel target = $region3
    $region8: #{tpu_custom_call.1} parent=1 // loop_exit
      _
    %1709 = vsyncpa [#allocation3], 1
    %s1710 = scalar_lea.sflag [#allocation3], 1
    %1711 = vsyncpa %s1710, 1
    %1712 = vsyncpa [#allocation6], 1
    %s1713 = scalar_lea.sflag [#allocation6], 1
    %1714 = vsyncpa %s1713, 1
    %1715 = vsyncpa [#allocation9], 1
    %s1716 = scalar_lea.sflag [#allocation9], 1
    %1717 = vsyncpa %s1716, 1
    %1718 = vsyncpa [#allocation4], 1
    %s1719 = scalar_lea.sflag [#allocation4], 1
    %1720 = vsyncpa %s1719, 1

</llo_original>
